<compile_context>
chip_gen: v7x
topology: tpu7x:2x2x1
jax: 0.10.0
libtpu: 0.0.40
codegen_flags: <defaults>
</compile_context>

<pallas_src>
import jax
import jax.numpy as jnp
import numpy as np
from jax import lax
from jax.experimental import pallas as pl
from jax.experimental.pallas import tpu as pltpu

CONV = 332.07156  # unit-conversion constant from the PyTorch module


def _pick_fold(B, max_fold=8):
    """Largest fold (batches per grid step) that keeps >= 2 grid steps."""
    best = 1
    for f in range(1, max_fold + 1):
        if B % f == 0 and B // f >= 2:
            best = f
    return best


def _electrostatics_kernel(mask_ref, xc_ref, xr_ref, si_ref, sj_ref,
                           ps_ref, q12_ref, opp_ref, wd_ref, out_ref):
    Bt = mask_ref.shape[0]

    wd = wd_ref[0, 0]          # scalar from SMEM
    q12 = q12_ref[...]         # (N, N)  batch-invariant
    opp = opp_ref[...]         # (N, N)  batch-invariant
    ps = ps_ref[...]           # (N, 3)  batch-invariant

    for t in range(Bt):        # static unroll over the folded batches
        m = mask_ref[t].astype(jnp.float32)   # (N, N)
        xc = xc_ref[t]                        # (N, 3)  X columns (i on sublanes)
        xr = xr_ref[t]                        # (3, N)  X rows    (j on lanes)
        s_i = si_ref[t]                       # (N, 1)
        s_j = sj_ref[t]                       # (1, N)

        # Pairwise displacement planes v[k][i,j] = X[j,k] - X[i,k]; accumulators
        # are initialized with the k=0 term (no zeros init).
        v0 = xr[0:1, :] - xc[:, 0:1]
        v0e = v0 + 1e-6
        d2 = v0 * v0
        n2 = v0e * v0e
        oqp = v0e * ps[:, 0:1]
        for k in (1, 2):
            vk = xr[k:k + 1, :] - xc[:, k:k + 1]
            vke = vk + 1e-6
            d2 = d2 + vk * vk
            n2 = n2 + vke * vke
            oqp = oqp + vke * ps[:, k:k + 1]
        d2 = d2 + 3e-6         # the three (V*V + 1e-6) epsilons folded into one add

        # invD = 1/(sqrt(d2)+1e-6): EUP approx reciprocal + 2 Newton steps keeps the
        # result f32-exact (invD is raised to the 6th power downstream).
        x = jnp.sqrt(d2) + 1e-6
        r = pl.reciprocal(x, approx=True)
        r = r * (2.0 - x * r)
        invD = r * (2.0 - x * r)

        # 1 / max(||V + 1e-6||, 1e-12) of F.normalize, on the EUP via rsqrt.
        inv_norm = lax.rsqrt(jnp.maximum(n2, 1e-24))

        screening = s_j + s_i + invD * wd     # (N, N)
        invD2 = invD * invD
        invD3 = invD2 * invD

        E = m * (q12 * invD * screening
                 + oqp * inv_norm * (invD2 * invD2)
                 + opp * (invD3 * invD3))

        out_ref[t] = jnp.sum(E).reshape(1, 1)  # per-batch partial energy


def electrostatics_forward(X, embs, qs, Ps, paired_mask, screening_filter):
    B, N, _ = X.shape
    C = embs.shape[-1]

    X = X.astype(jnp.float32)
    embs = embs.astype(jnp.float32)
    Ps = Ps.astype(jnp.float32)
    w = screening_filter.astype(jnp.float32)
    q = qs.reshape(N).astype(jnp.float32)

    # ---- batch-invariant planes, hoisted out of the kernel (computed once) ----
    Q12 = jnp.outer(q, q)                         # (N, N)
    OPP = Ps @ Ps.T                               # (N, N)

    # ---- screening projections: one batched matmul (B,N,C) @ (C,2) ----
    wi = w[C:2 * C, 0]                            # weights on emb[i]
    wj = w[:C, 0]                                 # weights on emb[j]
    proj = embs @ jnp.stack([wi, wj], axis=1)     # (B, N, 2)
    s_i = proj[:, :, 0:1]                         # (B, N, 1)
    s_j = proj[:, :, 1].reshape(B, 1, N)          # (B, 1, N)
    wd = w[2 * C:].reshape(1, 1)                  # (1, 1) -> SMEM scalar

    # ---- layout plumbing: X as both columns (B,N,3) and rows (B,3,N) ----
    Xrow = jnp.transpose(X, (0, 2, 1))            # (B, 3, N)

    Bt = _pick_fold(B)
    G = B // Bt

    partials = pl.pallas_call(
        _electrostatics_kernel,
        out_shape=jax.ShapeDtypeStruct((B, 1, 1), jnp.float32),
        grid_spec=pltpu.PrefetchScalarGridSpec(
            num_scalar_prefetch=0,
            grid=(G,),
            in_specs=[
                pl.BlockSpec((Bt, N, N), lambda g: (g, 0, 0)),   # paired_mask (int8/f32)
                pl.BlockSpec((Bt, N, 3), lambda g: (g, 0, 0)),   # X columns
                pl.BlockSpec((Bt, 3, N), lambda g: (g, 0, 0)),   # X rows
                pl.BlockSpec((Bt, N, 1), lambda g: (g, 0, 0)),   # s_i
                pl.BlockSpec((Bt, 1, N), lambda g: (g, 0, 0)),   # s_j
                pl.BlockSpec((N, 3), lambda g: (0, 0)),          # Ps   (batch-invariant)
                pl.BlockSpec((N, N), lambda g: (0, 0)),          # Q12  (batch-invariant)
                pl.BlockSpec((N, N), lambda g: (0, 0)),          # OPP  (batch-invariant)
                pl.BlockSpec(memory_space=pltpu.MemorySpace.SMEM),  # wd scalar
            ],
            out_specs=pl.BlockSpec((Bt, 1, 1), lambda g: (g, 0, 0)),
        ),
        compiler_params=pltpu.CompilerParams(
            dimension_semantics=("parallel",)),
    )(paired_mask, X, Xrow, s_i, s_j, Ps, Q12, OPP, wd)

    total = 0.5 * CONV * jnp.sum(partials)
    # NaN guard from the PyTorch module.
    return jnp.where(jnp.isnan(total), jnp.float32(1e-6), total)


def _reference(X, embs, qs, Ps, mask, w):
    """Pure-JAX mirror of the PyTorch forward (for a sanity check)."""
    B, N, _ = X.shape
    C = embs.shape[-1]
    V = X[:, None, :, :] - X[:, :, None, :]
    D = jnp.sqrt(jnp.sum(V * V + 1e-6, axis=-1))
    Vn = V + 1e-6
    Vn = Vn / jnp.maximum(jnp.linalg.norm(Vn, axis=-1, keepdims=True), 1e-12)
    invD = 1.0 / (D + 1e-6)
    OqP = jnp.einsum('bijk,ik->bij', Vn, Ps)
    OPP = jnp.einsum('ik,jk->ij', Ps, Ps)[None]
    q = qs.reshape(-1)
    Q12 = jnp.outer(q, q)[None]
    s_j = embs @ w[:C, 0]
    s_i = embs @ w[C:2 * C, 0]
    screening = s_j[:, None, :] + s_i[:, :, None] + invD * w[2 * C, 0]
    E_qq = Q12 * invD * screening
    invD3 = invD ** 3
    E_qP = OqP * invD * invD3
    E_PP = OPP * invD3 * invD3
    E = CONV * mask * (E_qq + E_qP + E_PP)
    total = jnp.sum(E) * 0.5
    total = jnp.where(jnp.isnan(total), jnp.float32(1e-6), total)
    abs_scale = jnp.sum(jnp.abs(E)) * 0.5
    return total, abs_scale


if __name__ == "__main__":
    B, N, C = 8, 16, 32          # exercises the batch-fold path (Bt=4, grid=(2,))
    key = jax.random.PRNGKey(0)
    kx, ke, kq, kp, km, kw = jax.random.split(key, 6)

    X = 3.0 * jax.random.normal(kx, (B, N, 3), jnp.float32)
    embs = jax.random.normal(ke, (B, N, C), jnp.float32)
    qs = jax.random.normal(kq, (N, 1), jnp.float32)
    Ps = jax.random.normal(kp, (N, 3), jnp.float32)
    mask_f = (jax.random.uniform(km, (B, N, N)) > 0.5).astype(jnp.float32)
    mask_f = mask_f * (1.0 - jnp.eye(N, dtype=jnp.float32)[None])   # no self-pairs
    paired_mask = mask_f.astype(jnp.int8)   # int8 mask -> 4x smaller N^2 DMA stream

    # Deterministic xavier_normal_(gain=0.1) on the (2C+1, 1) screening filter.
    fan_out, fan_in = 2 * C + 1, 1
    std = 0.1 * (2.0 / (fan_in + fan_out)) ** 0.5
    screening_filter = std * jax.random.normal(kw, (2 * C + 1, 1), jnp.float32)

    e_kernel = jax.jit(electrostatics_forward)(
        X, embs, qs, Ps, paired_mask, screening_filter)
    e_kernel = jax.block_until_ready(e_kernel)

    e_ref, abs_scale = _reference(X, embs, qs, Ps, mask_f, screening_filter)
    assert np.isfinite(float(e_kernel))
    assert abs(float(e_kernel) - float(e_ref)) <= 1e-5 * float(abs_scale) + 1e-3, (
        float(e_kernel), float(e_ref))

    print("KERNEL_OK")
</pallas_src>

<mosaic_0001>
module attributes {stable_mosaic.version = 11 : i64} {
  func.func @_electrostatics_kernel(%arg0: i32, %arg1: memref<4x16x16xi8, #tpu.memory_space<vmem>>, %arg2: memref<4x16x3xf32, #tpu.memory_space<vmem>>, %arg3: memref<4x3x16xf32, #tpu.memory_space<vmem>>, %arg4: memref<4x16x1xf32, #tpu.memory_space<vmem>>, %arg5: memref<4x1x16xf32, #tpu.memory_space<vmem>>, %arg6: memref<16x3xf32, #tpu.memory_space<vmem>>, %arg7: memref<16x16xf32, #tpu.memory_space<vmem>>, %arg8: memref<16x16xf32, #tpu.memory_space<vmem>>, %arg9: memref<1x1xf32, #tpu.memory_space<smem>>, %arg10: memref<4x1x1xf32, #tpu.memory_space<vmem>>) attributes {dimension_semantics = [#tpu.dimension_semantics<parallel>], iteration_bounds = array<i64: 2>, scalar_prefetch = 0 : i64, scratch_operands = 0 : i64, tpu.core_type = #tpu.core_type<tc>, window_params = [{transform_indices = @transform_0, window_bounds = array<i64: 4, 16, 16>}, {transform_indices = @transform_1, window_bounds = array<i64: 4, 16, 3>}, {transform_indices = @transform_2, window_bounds = array<i64: 4, 3, 16>}, {transform_indices = @transform_3, window_bounds = array<i64: 4, 16, 1>}, {transform_indices = @transform_4, window_bounds = array<i64: 4, 1, 16>}, {pipeline_mode = #tpu.pipeline_mode<synchronous>, transform_indices = @transform_5, window_bounds = array<i64: 16, 3>}, {pipeline_mode = #tpu.pipeline_mode<synchronous>, transform_indices = @transform_6, window_bounds = array<i64: 16, 16>}, {pipeline_mode = #tpu.pipeline_mode<synchronous>, transform_indices = @transform_7, window_bounds = array<i64: 16, 16>}, {transform_indices = @transform_8, window_bounds = array<i64: 1, 1>}, {transform_indices = @transform_9, window_bounds = array<i64: 4, 1, 1>}]} {
    %c0 = arith.constant 0 : index
    %c0_0 = arith.constant 0 : index
    %0 = memref.load %arg9[%c0, %c0_0] : memref<1x1xf32, #tpu.memory_space<smem>>
    %c0_1 = arith.constant 0 : index
    %c0_2 = arith.constant 0 : index
    %1 = vector.load %arg7[%c0_1, %c0_2] : memref<16x16xf32, #tpu.memory_space<vmem>>, vector<16x16xf32>
    %c0_3 = arith.constant 0 : index
    %c0_4 = arith.constant 0 : index
    %2 = vector.load %arg8[%c0_3, %c0_4] : memref<16x16xf32, #tpu.memory_space<vmem>>, vector<16x16xf32>
    %c0_5 = arith.constant 0 : index
    %c0_6 = arith.constant 0 : index
    %3 = vector.load %arg6[%c0_5, %c0_6] : memref<16x3xf32, #tpu.memory_space<vmem>>, vector<16x3xf32>
    %c0_7 = arith.constant 0 : index
    %c0_8 = arith.constant 0 : index
    %c0_9 = arith.constant 0 : index
    %4 = vector.load %arg1[%c0_7, %c0_8, %c0_9] : memref<4x16x16xi8, #tpu.memory_space<vmem>>, vector<1x16x16xi8>
    %5 = vector.shape_cast %4 : vector<1x16x16xi8> to vector<16x16xi8>
    %6 = arith.sitofp %5 : vector<16x16xi8> to vector<16x16xf32>
    %c0_10 = arith.constant 0 : index
    %c0_11 = arith.constant 0 : index
    %c0_12 = arith.constant 0 : index
    %7 = vector.load %arg2[%c0_10, %c0_11, %c0_12] : memref<4x16x3xf32, #tpu.memory_space<vmem>>, vector<1x16x3xf32>
    %8 = vector.shape_cast %7 : vector<1x16x3xf32> to vector<16x3xf32>
    %c0_13 = arith.constant 0 : index
    %c0_14 = arith.constant 0 : index
    %c0_15 = arith.constant 0 : index
    %9 = vector.load %arg3[%c0_13, %c0_14, %c0_15] : memref<4x3x16xf32, #tpu.memory_space<vmem>>, vector<1x3x16xf32>
    %10 = vector.shape_cast %9 : vector<1x3x16xf32> to vector<3x16xf32>
    %c0_16 = arith.constant 0 : index
    %c0_17 = arith.constant 0 : index
    %c0_18 = arith.constant 0 : index
    %11 = vector.load %arg4[%c0_16, %c0_17, %c0_18] : memref<4x16x1xf32, #tpu.memory_space<vmem>>, vector<1x16x1xf32>
    %12 = vector.shape_cast %11 : vector<1x16x1xf32> to vector<16x1xf32>
    %c0_19 = arith.constant 0 : index
    %c0_20 = arith.constant 0 : index
    %c0_21 = arith.constant 0 : index
    %13 = vector.load %arg5[%c0_19, %c0_20, %c0_21] : memref<4x1x16xf32, #tpu.memory_space<vmem>>, vector<1x1x16xf32>
    %14 = vector.shape_cast %13 : vector<1x1x16xf32> to vector<1x16xf32>
    %15 = vector.extract_strided_slice %10 {offsets = [0, 0], sizes = [1, 16], strides = [1, 1]} : vector<3x16xf32> to vector<1x16xf32>
    %16 = vector.extract_strided_slice %8 {offsets = [0, 0], sizes = [16, 1], strides = [1, 1]} : vector<16x3xf32> to vector<16x1xf32>
    %17 = vector.broadcast %15 : vector<1x16xf32> to vector<16x16xf32>
    %18 = vector.broadcast %16 : vector<16x1xf32> to vector<16x16xf32>
    %19 = arith.subf %17, %18 : vector<16x16xf32>
    %cst = arith.constant 9.99999997E-7 : f32
    %20 = vector.broadcast %cst : f32 to vector<16x16xf32>
    %21 = arith.addf %19, %20 : vector<16x16xf32>
    %22 = arith.mulf %19, %19 : vector<16x16xf32>
    %23 = arith.mulf %21, %21 : vector<16x16xf32>
    %24 = vector.extract_strided_slice %3 {offsets = [0, 0], sizes = [16, 1], strides = [1, 1]} : vector<16x3xf32> to vector<16x1xf32>
    %25 = vector.broadcast %24 : vector<16x1xf32> to vector<16x16xf32>
    %26 = arith.mulf %21, %25 : vector<16x16xf32>
    %27 = vector.extract_strided_slice %10 {offsets = [1, 0], sizes = [1, 16], strides = [1, 1]} : vector<3x16xf32> to vector<1x16xf32>
    %28 = vector.extract_strided_slice %8 {offsets = [0, 1], sizes = [16, 1], strides = [1, 1]} : vector<16x3xf32> to vector<16x1xf32>
    %29 = vector.broadcast %27 : vector<1x16xf32> to vector<16x16xf32>
    %30 = vector.broadcast %28 : vector<16x1xf32> to vector<16x16xf32>
    %31 = arith.subf %29, %30 : vector<16x16xf32>
    %cst_22 = arith.constant 9.99999997E-7 : f32
    %32 = vector.broadcast %cst_22 : f32 to vector<16x16xf32>
    %33 = arith.addf %31, %32 : vector<16x16xf32>
    %34 = arith.mulf %31, %31 : vector<16x16xf32>
    %35 = arith.addf %22, %34 : vector<16x16xf32>
    %36 = arith.mulf %33, %33 : vector<16x16xf32>
    %37 = arith.addf %23, %36 : vector<16x16xf32>
    %38 = vector.extract_strided_slice %3 {offsets = [0, 1], sizes = [16, 1], strides = [1, 1]} : vector<16x3xf32> to vector<16x1xf32>
    %39 = vector.broadcast %38 : vector<16x1xf32> to vector<16x16xf32>
    %40 = arith.mulf %33, %39 : vector<16x16xf32>
    %41 = arith.addf %26, %40 : vector<16x16xf32>
    %42 = vector.extract_strided_slice %10 {offsets = [2, 0], sizes = [1, 16], strides = [1, 1]} : vector<3x16xf32> to vector<1x16xf32>
    %43 = vector.extract_strided_slice %8 {offsets = [0, 2], sizes = [16, 1], strides = [1, 1]} : vector<16x3xf32> to vector<16x1xf32>
    %44 = vector.broadcast %42 : vector<1x16xf32> to vector<16x16xf32>
    %45 = vector.broadcast %43 : vector<16x1xf32> to vector<16x16xf32>
    %46 = arith.subf %44, %45 : vector<16x16xf32>
    %cst_23 = arith.constant 9.99999997E-7 : f32
    %47 = vector.broadcast %cst_23 : f32 to vector<16x16xf32>
    %48 = arith.addf %46, %47 : vector<16x16xf32>
    %49 = arith.mulf %46, %46 : vector<16x16xf32>
    %50 = arith.addf %35, %49 : vector<16x16xf32>
    %51 = arith.mulf %48, %48 : vector<16x16xf32>
    %52 = arith.addf %37, %51 : vector<16x16xf32>
    %53 = vector.extract_strided_slice %3 {offsets = [0, 2], sizes = [16, 1], strides = [1, 1]} : vector<16x3xf32> to vector<16x1xf32>
    %54 = vector.broadcast %53 : vector<16x1xf32> to vector<16x16xf32>
    %55 = arith.mulf %48, %54 : vector<16x16xf32>
    %56 = arith.addf %41, %55 : vector<16x16xf32>
    %cst_24 = arith.constant 3.000000e-06 : f32
    %57 = vector.broadcast %cst_24 : f32 to vector<16x16xf32>
    %58 = arith.addf %50, %57 : vector<16x16xf32>
    %59 = math.sqrt %58 : vector<16x16xf32>
    %cst_25 = arith.constant 9.99999997E-7 : f32
    %60 = vector.broadcast %cst_25 : f32 to vector<16x16xf32>
    %61 = arith.addf %59, %60 : vector<16x16xf32>
    %62 = tpu.reciprocal %61 {approx = true} : vector<16x16xf32> -> vector<16x16xf32>
    %63 = arith.mulf %61, %62 : vector<16x16xf32>
    %cst_26 = arith.constant 2.000000e+00 : f32
    %64 = vector.broadcast %cst_26 : f32 to vector<16x16xf32>
    %65 = arith.subf %64, %63 : vector<16x16xf32>
    %66 = arith.mulf %62, %65 : vector<16x16xf32>
    %67 = arith.mulf %61, %66 : vector<16x16xf32>
    %cst_27 = arith.constant 2.000000e+00 : f32
    %68 = vector.broadcast %cst_27 : f32 to vector<16x16xf32>
    %69 = arith.subf %68, %67 : vector<16x16xf32>
    %70 = arith.mulf %66, %69 : vector<16x16xf32>
    %cst_28 = arith.constant 1.000000e-24 : f32
    %71 = vector.broadcast %cst_28 : f32 to vector<16x16xf32>
    %72 = arith.maximumf %52, %71 : vector<16x16xf32>
    %73 = math.rsqrt %72 : vector<16x16xf32>
    %74 = vector.broadcast %14 : vector<1x16xf32> to vector<16x16xf32>
    %75 = vector.broadcast %12 : vector<16x1xf32> to vector<16x16xf32>
    %76 = arith.addf %74, %75 : vector<16x16xf32>
    %77 = vector.broadcast %0 : f32 to vector<16x16xf32>
    %78 = arith.mulf %70, %77 : vector<16x16xf32>
    %79 = arith.addf %76, %78 : vector<16x16xf32>
    %80 = arith.mulf %70, %70 : vector<16x16xf32>
    %81 = arith.mulf %80, %70 : vector<16x16xf32>
    %82 = arith.mulf %1, %70 : vector<16x16xf32>
    %83 = arith.mulf %82, %79 : vector<16x16xf32>
    %84 = arith.mulf %56, %73 : vector<16x16xf32>
    %85 = arith.mulf %80, %80 : vector<16x16xf32>
    %86 = arith.mulf %84, %85 : vector<16x16xf32>
    %87 = arith.addf %83, %86 : vector<16x16xf32>
    %88 = arith.mulf %81, %81 : vector<16x16xf32>
    %89 = arith.mulf %2, %88 : vector<16x16xf32>
    %90 = arith.addf %87, %89 : vector<16x16xf32>
    %91 = arith.mulf %6, %90 : vector<16x16xf32>
    %92 = vector.shape_cast %91 : vector<16x16xf32> to vector<1x16x16xf32>
    %cst_29 = arith.constant dense<0.000000e+00> : vector<1xf32>
    %93 = vector.multi_reduction <add>, %92, %cst_29 [1, 2] : vector<1x16x16xf32> to vector<1xf32>
    %94 = vector.shape_cast %93 : vector<1xf32> to vector<1x1x1xf32>
    %95 = vector.extract %94[0, 0, 0] : f32 from vector<1x1x1xf32>
    %96 = vector.broadcast %95 : f32 to vector<1x1xf32>
    %c0_30 = arith.constant 0 : index
    %c0_31 = arith.constant 0 : index
    %c0_32 = arith.constant 0 : index
    %97 = vector.load %arg10[%c0_30, %c0_31, %c0_32] : memref<4x1x1xf32, #tpu.memory_space<vmem>>, vector<1x1x1xf32>
    %98 = vector.shape_cast %97 : vector<1x1x1xf32> to vector<1x1xf32>
    %99 = vector.shape_cast %96 : vector<1x1xf32> to vector<1x1x1xf32>
    tpu.vector_store %arg10[%c0_30, %c0_31, %c0_32], %99 {strides = array<i32>} : memref<4x1x1xf32, #tpu.memory_space<vmem>>, vector<1x1x1xf32>,
    %c1 = arith.constant 1 : index
    %c0_33 = arith.constant 0 : index
    %c0_34 = arith.constant 0 : index
    %100 = vector.load %arg1[%c1, %c0_33, %c0_34] : memref<4x16x16xi8, #tpu.memory_space<vmem>>, vector<1x16x16xi8>
    %101 = vector.shape_cast %100 : vector<1x16x16xi8> to vector<16x16xi8>
    %102 = arith.sitofp %101 : vector<16x16xi8> to vector<16x16xf32>
    %c1_35 = arith.constant 1 : index
    %c0_36 = arith.constant 0 : index
    %c0_37 = arith.constant 0 : index
    %103 = vector.load %arg2[%c1_35, %c0_36, %c0_37] : memref<4x16x3xf32, #tpu.memory_space<vmem>>, vector<1x16x3xf32>
    %104 = vector.shape_cast %103 : vector<1x16x3xf32> to vector<16x3xf32>
    %c1_38 = arith.constant 1 : index
    %c0_39 = arith.constant 0 : index
    %c0_40 = arith.constant 0 : index
    %105 = vector.load %arg3[%c1_38, %c0_39, %c0_40] : memref<4x3x16xf32, #tpu.memory_space<vmem>>, vector<1x3x16xf32>
    %106 = vector.shape_cast %105 : vector<1x3x16xf32> to vector<3x16xf32>
    %c1_41 = arith.constant 1 : index
    %c0_42 = arith.constant 0 : index
    %c0_43 = arith.constant 0 : index
    %107 = vector.load %arg4[%c1_41, %c0_42, %c0_43] : memref<4x16x1xf32, #tpu.memory_space<vmem>>, vector<1x16x1xf32>
    %108 = vector.shape_cast %107 : vector<1x16x1xf32> to vector<16x1xf32>
    %c1_44 = arith.constant 1 : index
    %c0_45 = arith.constant 0 : index
    %c0_46 = arith.constant 0 : index
    %109 = vector.load %arg5[%c1_44, %c0_45, %c0_46] : memref<4x1x16xf32, #tpu.memory_space<vmem>>, vector<1x1x16xf32>
    %110 = vector.shape_cast %109 : vector<1x1x16xf32> to vector<1x16xf32>
    %111 = vector.extract_strided_slice %106 {offsets = [0, 0], sizes = [1, 16], strides = [1, 1]} : vector<3x16xf32> to vector<1x16xf32>
    %112 = vector.extract_strided_slice %104 {offsets = [0, 0], sizes = [16, 1], strides = [1, 1]} : vector<16x3xf32> to vector<16x1xf32>
    %113 = vector.broadcast %111 : vector<1x16xf32> to vector<16x16xf32>
    %114 = vector.broadcast %112 : vector<16x1xf32> to vector<16x16xf32>
    %115 = arith.subf %113, %114 : vector<16x16xf32>
    %cst_47 = arith.constant 9.99999997E-7 : f32
    %116 = vector.broadcast %cst_47 : f32 to vector<16x16xf32>
    %117 = arith.addf %115, %116 : vector<16x16xf32>
    %118 = arith.mulf %115, %115 : vector<16x16xf32>
    %119 = arith.mulf %117, %117 : vector<16x16xf32>
    %120 = vector.extract_strided_slice %3 {offsets = [0, 0], sizes = [16, 1], strides = [1, 1]} : vector<16x3xf32> to vector<16x1xf32>
    %121 = vector.broadcast %120 : vector<16x1xf32> to vector<16x16xf32>
    %122 = arith.mulf %117, %121 : vector<16x16xf32>
    %123 = vector.extract_strided_slice %106 {offsets = [1, 0], sizes = [1, 16], strides = [1, 1]} : vector<3x16xf32> to vector<1x16xf32>
    %124 = vector.extract_strided_slice %104 {offsets = [0, 1], sizes = [16, 1], strides = [1, 1]} : vector<16x3xf32> to vector<16x1xf32>
    %125 = vector.broadcast %123 : vector<1x16xf32> to vector<16x16xf32>
    %126 = vector.broadcast %124 : vector<16x1xf32> to vector<16x16xf32>
    %127 = arith.subf %125, %126 : vector<16x16xf32>
    %cst_48 = arith.constant 9.99999997E-7 : f32
    %128 = vector.broadcast %cst_48 : f32 to vector<16x16xf32>
    %129 = arith.addf %127, %128 : vector<16x16xf32>
    %130 = arith.mulf %127, %127 : vector<16x16xf32>
    %131 = arith.addf %118, %130 : vector<16x16xf32>
    %132 = arith.mulf %129, %129 : vector<16x16xf32>
    %133 = arith.addf %119, %132 : vector<16x16xf32>
    %134 = vector.extract_strided_slice %3 {offsets = [0, 1], sizes = [16, 1], strides = [1, 1]} : vector<16x3xf32> to vector<16x1xf32>
    %135 = vector.broadcast %134 : vector<16x1xf32> to vector<16x16xf32>
    %136 = arith.mulf %129, %135 : vector<16x16xf32>
    %137 = arith.addf %122, %136 : vector<16x16xf32>
    %138 = vector.extract_strided_slice %106 {offsets = [2, 0], sizes = [1, 16], strides = [1, 1]} : vector<3x16xf32> to vector<1x16xf32>
    %139 = vector.extract_strided_slice %104 {offsets = [0, 2], sizes = [16, 1], strides = [1, 1]} : vector<16x3xf32> to vector<16x1xf32>
    %140 = vector.broadcast %138 : vector<1x16xf32> to vector<16x16xf32>
    %141 = vector.broadcast %139 : vector<16x1xf32> to vector<16x16xf32>
    %142 = arith.subf %140, %141 : vector<16x16xf32>
    %cst_49 = arith.constant 9.99999997E-7 : f32
    %143 = vector.broadcast %cst_49 : f32 to vector<16x16xf32>
    %144 = arith.addf %142, %143 : vector<16x16xf32>
    %145 = arith.mulf %142, %142 : vector<16x16xf32>
    %146 = arith.addf %131, %145 : vector<16x16xf32>
    %147 = arith.mulf %144, %144 : vector<16x16xf32>
    %148 = arith.addf %133, %147 : vector<16x16xf32>
    %149 = vector.extract_strided_slice %3 {offsets = [0, 2], sizes = [16, 1], strides = [1, 1]} : vector<16x3xf32> to vector<16x1xf32>
    %150 = vector.broadcast %149 : vector<16x1xf32> to vector<16x16xf32>
    %151 = arith.mulf %144, %150 : vector<16x16xf32>
    %152 = arith.addf %137, %151 : vector<16x16xf32>
    %cst_50 = arith.constant 3.000000e-06 : f32
    %153 = vector.broadcast %cst_50 : f32 to vector<16x16xf32>
    %154 = arith.addf %146, %153 : vector<16x16xf32>
    %155 = math.sqrt %154 : vector<16x16xf32>
    %cst_51 = arith.constant 9.99999997E-7 : f32
    %156 = vector.broadcast %cst_51 : f32 to vector<16x16xf32>
    %157 = arith.addf %155, %156 : vector<16x16xf32>
    %158 = tpu.reciprocal %157 {approx = true} : vector<16x16xf32> -> vector<16x16xf32>
    %159 = arith.mulf %157, %158 : vector<16x16xf32>
    %cst_52 = arith.constant 2.000000e+00 : f32
    %160 = vector.broadcast %cst_52 : f32 to vector<16x16xf32>
    %161 = arith.subf %160, %159 : vector<16x16xf32>
    %162 = arith.mulf %158, %161 : vector<16x16xf32>
    %163 = arith.mulf %157, %162 : vector<16x16xf32>
    %cst_53 = arith.constant 2.000000e+00 : f32
    %164 = vector.broadcast %cst_53 : f32 to vector<16x16xf32>
    %165 = arith.subf %164, %163 : vector<16x16xf32>
    %166 = arith.mulf %162, %165 : vector<16x16xf32>
    %cst_54 = arith.constant 1.000000e-24 : f32
    %167 = vector.broadcast %cst_54 : f32 to vector<16x16xf32>
    %168 = arith.maximumf %148, %167 : vector<16x16xf32>
    %169 = math.rsqrt %168 : vector<16x16xf32>
    %170 = vector.broadcast %110 : vector<1x16xf32> to vector<16x16xf32>
    %171 = vector.broadcast %108 : vector<16x1xf32> to vector<16x16xf32>
    %172 = arith.addf %170, %171 : vector<16x16xf32>
    %173 = vector.broadcast %0 : f32 to vector<16x16xf32>
    %174 = arith.mulf %166, %173 : vector<16x16xf32>
    %175 = arith.addf %172, %174 : vector<16x16xf32>
    %176 = arith.mulf %166, %166 : vector<16x16xf32>
    %177 = arith.mulf %176, %166 : vector<16x16xf32>
    %178 = arith.mulf %1, %166 : vector<16x16xf32>
    %179 = arith.mulf %178, %175 : vector<16x16xf32>
    %180 = arith.mulf %152, %169 : vector<16x16xf32>
    %181 = arith.mulf %176, %176 : vector<16x16xf32>
    %182 = arith.mulf %180, %181 : vector<16x16xf32>
    %183 = arith.addf %179, %182 : vector<16x16xf32>
    %184 = arith.mulf %177, %177 : vector<16x16xf32>
    %185 = arith.mulf %2, %184 : vector<16x16xf32>
    %186 = arith.addf %183, %185 : vector<16x16xf32>
    %187 = arith.mulf %102, %186 : vector<16x16xf32>
    %188 = vector.shape_cast %187 : vector<16x16xf32> to vector<1x16x16xf32>
    %cst_55 = arith.constant dense<0.000000e+00> : vector<1xf32>
    %189 = vector.multi_reduction <add>, %188, %cst_55 [1, 2] : vector<1x16x16xf32> to vector<1xf32>
    %190 = vector.shape_cast %189 : vector<1xf32> to vector<1x1x1xf32>
    %191 = vector.extract %190[0, 0, 0] : f32 from vector<1x1x1xf32>
    %192 = vector.broadcast %191 : f32 to vector<1x1xf32>
    %c1_56 = arith.constant 1 : index
    %c0_57 = arith.constant 0 : index
    %c0_58 = arith.constant 0 : index
    %193 = vector.load %arg10[%c1_56, %c0_57, %c0_58] : memref<4x1x1xf32, #tpu.memory_space<vmem>>, vector<1x1x1xf32>
    %194 = vector.shape_cast %193 : vector<1x1x1xf32> to vector<1x1xf32>
    %195 = vector.shape_cast %192 : vector<1x1xf32> to vector<1x1x1xf32>
    tpu.vector_store %arg10[%c1_56, %c0_57, %c0_58], %195 {strides = array<i32>} : memref<4x1x1xf32, #tpu.memory_space<vmem>>, vector<1x1x1xf32>,
    %c2 = arith.constant 2 : index
    %c0_59 = arith.constant 0 : index
    %c0_60 = arith.constant 0 : index
    %196 = vector.load %arg1[%c2, %c0_59, %c0_60] : memref<4x16x16xi8, #tpu.memory_space<vmem>>, vector<1x16x16xi8>
    %197 = vector.shape_cast %196 : vector<1x16x16xi8> to vector<16x16xi8>
    %198 = arith.sitofp %197 : vector<16x16xi8> to vector<16x16xf32>
    %c2_61 = arith.constant 2 : index
    %c0_62 = arith.constant 0 : index
    %c0_63 = arith.constant 0 : index
    %199 = vector.load %arg2[%c2_61, %c0_62, %c0_63] : memref<4x16x3xf32, #tpu.memory_space<vmem>>, vector<1x16x3xf32>
    %200 = vector.shape_cast %199 : vector<1x16x3xf32> to vector<16x3xf32>
    %c2_64 = arith.constant 2 : index
    %c0_65 = arith.constant 0 : index
    %c0_66 = arith.constant 0 : index
    %201 = vector.load %arg3[%c2_64, %c0_65, %c0_66] : memref<4x3x16xf32, #tpu.memory_space<vmem>>, vector<1x3x16xf32>
    %202 = vector.shape_cast %201 : vector<1x3x16xf32> to vector<3x16xf32>
    %c2_67 = arith.constant 2 : index
    %c0_68 = arith.constant 0 : index
    %c0_69 = arith.constant 0 : index
    %203 = vector.load %arg4[%c2_67, %c0_68, %c0_69] : memref<4x16x1xf32, #tpu.memory_space<vmem>>, vector<1x16x1xf32>
    %204 = vector.shape_cast %203 : vector<1x16x1xf32> to vector<16x1xf32>
    %c2_70 = arith.constant 2 : index
    %c0_71 = arith.constant 0 : index
    %c0_72 = arith.constant 0 : index
    %205 = vector.load %arg5[%c2_70, %c0_71, %c0_72] : memref<4x1x16xf32, #tpu.memory_space<vmem>>, vector<1x1x16xf32>
    %206 = vector.shape_cast %205 : vector<1x1x16xf32> to vector<1x16xf32>
    %207 = vector.extract_strided_slice %202 {offsets = [0, 0], sizes = [1, 16], strides = [1, 1]} : vector<3x16xf32> to vector<1x16xf32>
    %208 = vector.extract_strided_slice %200 {offsets = [0, 0], sizes = [16, 1], strides = [1, 1]} : vector<16x3xf32> to vector<16x1xf32>
    %209 = vector.broadcast %207 : vector<1x16xf32> to vector<16x16xf32>
    %210 = vector.broadcast %208 : vector<16x1xf32> to vector<16x16xf32>
    %211 = arith.subf %209, %210 : vector<16x16xf32>
    %cst_73 = arith.constant 9.99999997E-7 : f32
    %212 = vector.broadcast %cst_73 : f32 to vector<16x16xf32>
    %213 = arith.addf %211, %212 : vector<16x16xf32>
    %214 = arith.mulf %211, %211 : vector<16x16xf32>
    %215 = arith.mulf %213, %213 : vector<16x16xf32>
    %216 = vector.extract_strided_slice %3 {offsets = [0, 0], sizes = [16, 1], strides = [1, 1]} : vector<16x3xf32> to vector<16x1xf32>
    %217 = vector.broadcast %216 : vector<16x1xf32> to vector<16x16xf32>
    %218 = arith.mulf %213, %217 : vector<16x16xf32>
    %219 = vector.extract_strided_slice %202 {offsets = [1, 0], sizes = [1, 16], strides = [1, 1]} : vector<3x16xf32> to vector<1x16xf32>
    %220 = vector.extract_strided_slice %200 {offsets = [0, 1], sizes = [16, 1], strides = [1, 1]} : vector<16x3xf32> to vector<16x1xf32>
    %221 = vector.broadcast %219 : vector<1x16xf32> to vector<16x16xf32>
    %222 = vector.broadcast %220 : vector<16x1xf32> to vector<16x16xf32>
    %223 = arith.subf %221, %222 : vector<16x16xf32>
    %cst_74 = arith.constant 9.99999997E-7 : f32
    %224 = vector.broadcast %cst_74 : f32 to vector<16x16xf32>
    %225 = arith.addf %223, %224 : vector<16x16xf32>
    %226 = arith.mulf %223, %223 : vector<16x16xf32>
    %227 = arith.addf %214, %226 : vector<16x16xf32>
    %228 = arith.mulf %225, %225 : vector<16x16xf32>
    %229 = arith.addf %215, %228 : vector<16x16xf32>
    %230 = vector.extract_strided_slice %3 {offsets = [0, 1], sizes = [16, 1], strides = [1, 1]} : vector<16x3xf32> to vector<16x1xf32>
    %231 = vector.broadcast %230 : vector<16x1xf32> to vector<16x16xf32>
    %232 = arith.mulf %225, %231 : vector<16x16xf32>
    %233 = arith.addf %218, %232 : vector<16x16xf32>
    %234 = vector.extract_strided_slice %202 {offsets = [2, 0], sizes = [1, 16], strides = [1, 1]} : vector<3x16xf32> to vector<1x16xf32>
    %235 = vector.extract_strided_slice %200 {offsets = [0, 2], sizes = [16, 1], strides = [1, 1]} : vector<16x3xf32> to vector<16x1xf32>
    %236 = vector.broadcast %234 : vector<1x16xf32> to vector<16x16xf32>
    %237 = vector.broadcast %235 : vector<16x1xf32> to vector<16x16xf32>
    %238 = arith.subf %236, %237 : vector<16x16xf32>
    %cst_75 = arith.constant 9.99999997E-7 : f32
    %239 = vector.broadcast %cst_75 : f32 to vector<16x16xf32>
    %240 = arith.addf %238, %239 : vector<16x16xf32>
    %241 = arith.mulf %238, %238 : vector<16x16xf32>
    %242 = arith.addf %227, %241 : vector<16x16xf32>
    %243 = arith.mulf %240, %240 : vector<16x16xf32>
    %244 = arith.addf %229, %243 : vector<16x16xf32>
    %245 = vector.extract_strided_slice %3 {offsets = [0, 2], sizes = [16, 1], strides = [1, 1]} : vector<16x3xf32> to vector<16x1xf32>
    %246 = vector.broadcast %245 : vector<16x1xf32> to vector<16x16xf32>
    %247 = arith.mulf %240, %246 : vector<16x16xf32>
    %248 = arith.addf %233, %247 : vector<16x16xf32>
    %cst_76 = arith.constant 3.000000e-06 : f32
    %249 = vector.broadcast %cst_76 : f32 to vector<16x16xf32>
    %250 = arith.addf %242, %249 : vector<16x16xf32>
    %251 = math.sqrt %250 : vector<16x16xf32>
    %cst_77 = arith.constant 9.99999997E-7 : f32
    %252 = vector.broadcast %cst_77 : f32 to vector<16x16xf32>
    %253 = arith.addf %251, %252 : vector<16x16xf32>
    %254 = tpu.reciprocal %253 {approx = true} : vector<16x16xf32> -> vector<16x16xf32>
    %255 = arith.mulf %253, %254 : vector<16x16xf32>
    %cst_78 = arith.constant 2.000000e+00 : f32
    %256 = vector.broadcast %cst_78 : f32 to vector<16x16xf32>
    %257 = arith.subf %256, %255 : vector<16x16xf32>
    %258 = arith.mulf %254, %257 : vector<16x16xf32>
    %259 = arith.mulf %253, %258 : vector<16x16xf32>
    %cst_79 = arith.constant 2.000000e+00 : f32
    %260 = vector.broadcast %cst_79 : f32 to vector<16x16xf32>
    %261 = arith.subf %260, %259 : vector<16x16xf32>
    %262 = arith.mulf %258, %261 : vector<16x16xf32>
    %cst_80 = arith.constant 1.000000e-24 : f32
    %263 = vector.broadcast %cst_80 : f32 to vector<16x16xf32>
    %264 = arith.maximumf %244, %263 : vector<16x16xf32>
    %265 = math.rsqrt %264 : vector<16x16xf32>
    %266 = vector.broadcast %206 : vector<1x16xf32> to vector<16x16xf32>
    %267 = vector.broadcast %204 : vector<16x1xf32> to vector<16x16xf32>
    %268 = arith.addf %266, %267 : vector<16x16xf32>
    %269 = vector.broadcast %0 : f32 to vector<16x16xf32>
    %270 = arith.mulf %262, %269 : vector<16x16xf32>
    %271 = arith.addf %268, %270 : vector<16x16xf32>
    %272 = arith.mulf %262, %262 : vector<16x16xf32>
    %273 = arith.mulf %272, %262 : vector<16x16xf32>
    %274 = arith.mulf %1, %262 : vector<16x16xf32>
    %275 = arith.mulf %274, %271 : vector<16x16xf32>
    %276 = arith.mulf %248, %265 : vector<16x16xf32>
    %277 = arith.mulf %272, %272 : vector<16x16xf32>
    %278 = arith.mulf %276, %277 : vector<16x16xf32>
    %279 = arith.addf %275, %278 : vector<16x16xf32>
    %280 = arith.mulf %273, %273 : vector<16x16xf32>
    %281 = arith.mulf %2, %280 : vector<16x16xf32>
    %282 = arith.addf %279, %281 : vector<16x16xf32>
    %283 = arith.mulf %198, %282 : vector<16x16xf32>
    %284 = vector.shape_cast %283 : vector<16x16xf32> to vector<1x16x16xf32>
    %cst_81 = arith.constant dense<0.000000e+00> : vector<1xf32>
    %285 = vector.multi_reduction <add>, %284, %cst_81 [1, 2] : vector<1x16x16xf32> to vector<1xf32>
    %286 = vector.shape_cast %285 : vector<1xf32> to vector<1x1x1xf32>
    %287 = vector.extract %286[0, 0, 0] : f32 from vector<1x1x1xf32>
    %288 = vector.broadcast %287 : f32 to vector<1x1xf32>
    %c2_82 = arith.constant 2 : index
    %c0_83 = arith.constant 0 : index
    %c0_84 = arith.constant 0 : index
    %289 = vector.load %arg10[%c2_82, %c0_83, %c0_84] : memref<4x1x1xf32, #tpu.memory_space<vmem>>, vector<1x1x1xf32>
    %290 = vector.shape_cast %289 : vector<1x1x1xf32> to vector<1x1xf32>
    %291 = vector.shape_cast %288 : vector<1x1xf32> to vector<1x1x1xf32>
    tpu.vector_store %arg10[%c2_82, %c0_83, %c0_84], %291 {strides = array<i32>} : memref<4x1x1xf32, #tpu.memory_space<vmem>>, vector<1x1x1xf32>,
    %c3 = arith.constant 3 : index
    %c0_85 = arith.constant 0 : index
    %c0_86 = arith.constant 0 : index
    %292 = vector.load %arg1[%c3, %c0_85, %c0_86] : memref<4x16x16xi8, #tpu.memory_space<vmem>>, vector<1x16x16xi8>
    %293 = vector.shape_cast %292 : vector<1x16x16xi8> to vector<16x16xi8>
    %294 = arith.sitofp %293 : vector<16x16xi8> to vector<16x16xf32>
    %c3_87 = arith.constant 3 : index
    %c0_88 = arith.constant 0 : index
    %c0_89 = arith.constant 0 : index
    %295 = vector.load %arg2[%c3_87, %c0_88, %c0_89] : memref<4x16x3xf32, #tpu.memory_space<vmem>>, vector<1x16x3xf32>
    %296 = vector.shape_cast %295 : vector<1x16x3xf32> to vector<16x3xf32>
    %c3_90 = arith.constant 3 : index
    %c0_91 = arith.constant 0 : index
    %c0_92 = arith.constant 0 : index
    %297 = vector.load %arg3[%c3_90, %c0_91, %c0_92] : memref<4x3x16xf32, #tpu.memory_space<vmem>>, vector<1x3x16xf32>
    %298 = vector.shape_cast %297 : vector<1x3x16xf32> to vector<3x16xf32>
    %c3_93 = arith.constant 3 : index
    %c0_94 = arith.constant 0 : index
    %c0_95 = arith.constant 0 : index
    %299 = vector.load %arg4[%c3_93, %c0_94, %c0_95] : memref<4x16x1xf32, #tpu.memory_space<vmem>>, vector<1x16x1xf32>
    %300 = vector.shape_cast %299 : vector<1x16x1xf32> to vector<16x1xf32>
    %c3_96 = arith.constant 3 : index
    %c0_97 = arith.constant 0 : index
    %c0_98 = arith.constant 0 : index
    %301 = vector.load %arg5[%c3_96, %c0_97, %c0_98] : memref<4x1x16xf32, #tpu.memory_space<vmem>>, vector<1x1x16xf32>
    %302 = vector.shape_cast %301 : vector<1x1x16xf32> to vector<1x16xf32>
    %303 = vector.extract_strided_slice %298 {offsets = [0, 0], sizes = [1, 16], strides = [1, 1]} : vector<3x16xf32> to vector<1x16xf32>
    %304 = vector.extract_strided_slice %296 {offsets = [0, 0], sizes = [16, 1], strides = [1, 1]} : vector<16x3xf32> to vector<16x1xf32>
    %305 = vector.broadcast %303 : vector<1x16xf32> to vector<16x16xf32>
    %306 = vector.broadcast %304 : vector<16x1xf32> to vector<16x16xf32>
    %307 = arith.subf %305, %306 : vector<16x16xf32>
    %cst_99 = arith.constant 9.99999997E-7 : f32
    %308 = vector.broadcast %cst_99 : f32 to vector<16x16xf32>
    %309 = arith.addf %307, %308 : vector<16x16xf32>
    %310 = arith.mulf %307, %307 : vector<16x16xf32>
    %311 = arith.mulf %309, %309 : vector<16x16xf32>
    %312 = vector.extract_strided_slice %3 {offsets = [0, 0], sizes = [16, 1], strides = [1, 1]} : vector<16x3xf32> to vector<16x1xf32>
    %313 = vector.broadcast %312 : vector<16x1xf32> to vector<16x16xf32>
    %314 = arith.mulf %309, %313 : vector<16x16xf32>
    %315 = vector.extract_strided_slice %298 {offsets = [1, 0], sizes = [1, 16], strides = [1, 1]} : vector<3x16xf32> to vector<1x16xf32>
    %316 = vector.extract_strided_slice %296 {offsets = [0, 1], sizes = [16, 1], strides = [1, 1]} : vector<16x3xf32> to vector<16x1xf32>
    %317 = vector.broadcast %315 : vector<1x16xf32> to vector<16x16xf32>
    %318 = vector.broadcast %316 : vector<16x1xf32> to vector<16x16xf32>
    %319 = arith.subf %317, %318 : vector<16x16xf32>
    %cst_100 = arith.constant 9.99999997E-7 : f32
    %320 = vector.broadcast %cst_100 : f32 to vector<16x16xf32>
    %321 = arith.addf %319, %320 : vector<16x16xf32>
    %322 = arith.mulf %319, %319 : vector<16x16xf32>
    %323 = arith.addf %310, %322 : vector<16x16xf32>
    %324 = arith.mulf %321, %321 : vector<16x16xf32>
    %325 = arith.addf %311, %324 : vector<16x16xf32>
    %326 = vector.extract_strided_slice %3 {offsets = [0, 1], sizes = [16, 1], strides = [1, 1]} : vector<16x3xf32> to vector<16x1xf32>
    %327 = vector.broadcast %326 : vector<16x1xf32> to vector<16x16xf32>
    %328 = arith.mulf %321, %327 : vector<16x16xf32>
    %329 = arith.addf %314, %328 : vector<16x16xf32>
    %330 = vector.extract_strided_slice %298 {offsets = [2, 0], sizes = [1, 16], strides = [1, 1]} : vector<3x16xf32> to vector<1x16xf32>
    %331 = vector.extract_strided_slice %296 {offsets = [0, 2], sizes = [16, 1], strides = [1, 1]} : vector<16x3xf32> to vector<16x1xf32>
    %332 = vector.broadcast %330 : vector<1x16xf32> to vector<16x16xf32>
    %333 = vector.broadcast %331 : vector<16x1xf32> to vector<16x16xf32>
    %334 = arith.subf %332, %333 : vector<16x16xf32>
    %cst_101 = arith.constant 9.99999997E-7 : f32
    %335 = vector.broadcast %cst_101 : f32 to vector<16x16xf32>
    %336 = arith.addf %334, %335 : vector<16x16xf32>
    %337 = arith.mulf %334, %334 : vector<16x16xf32>
    %338 = arith.addf %323, %337 : vector<16x16xf32>
    %339 = arith.mulf %336, %336 : vector<16x16xf32>
    %340 = arith.addf %325, %339 : vector<16x16xf32>
    %341 = vector.extract_strided_slice %3 {offsets = [0, 2], sizes = [16, 1], strides = [1, 1]} : vector<16x3xf32> to vector<16x1xf32>
    %342 = vector.broadcast %341 : vector<16x1xf32> to vector<16x16xf32>
    %343 = arith.mulf %336, %342 : vector<16x16xf32>
    %344 = arith.addf %329, %343 : vector<16x16xf32>
    %cst_102 = arith.constant 3.000000e-06 : f32
    %345 = vector.broadcast %cst_102 : f32 to vector<16x16xf32>
    %346 = arith.addf %338, %345 : vector<16x16xf32>
    %347 = math.sqrt %346 : vector<16x16xf32>
    %cst_103 = arith.constant 9.99999997E-7 : f32
    %348 = vector.broadcast %cst_103 : f32 to vector<16x16xf32>
    %349 = arith.addf %347, %348 : vector<16x16xf32>
    %350 = tpu.reciprocal %349 {approx = true} : vector<16x16xf32> -> vector<16x16xf32>
    %351 = arith.mulf %349, %350 : vector<16x16xf32>
    %cst_104 = arith.constant 2.000000e+00 : f32
    %352 = vector.broadcast %cst_104 : f32 to vector<16x16xf32>
    %353 = arith.subf %352, %351 : vector<16x16xf32>
    %354 = arith.mulf %350, %353 : vector<16x16xf32>
    %355 = arith.mulf %349, %354 : vector<16x16xf32>
    %cst_105 = arith.constant 2.000000e+00 : f32
    %356 = vector.broadcast %cst_105 : f32 to vector<16x16xf32>
    %357 = arith.subf %356, %355 : vector<16x16xf32>
    %358 = arith.mulf %354, %357 : vector<16x16xf32>
    %cst_106 = arith.constant 1.000000e-24 : f32
    %359 = vector.broadcast %cst_106 : f32 to vector<16x16xf32>
    %360 = arith.maximumf %340, %359 : vector<16x16xf32>
    %361 = math.rsqrt %360 : vector<16x16xf32>
    %362 = vector.broadcast %302 : vector<1x16xf32> to vector<16x16xf32>
    %363 = vector.broadcast %300 : vector<16x1xf32> to vector<16x16xf32>
    %364 = arith.addf %362, %363 : vector<16x16xf32>
    %365 = vector.broadcast %0 : f32 to vector<16x16xf32>
    %366 = arith.mulf %358, %365 : vector<16x16xf32>
    %367 = arith.addf %364, %366 : vector<16x16xf32>
    %368 = arith.mulf %358, %358 : vector<16x16xf32>
    %369 = arith.mulf %368, %358 : vector<16x16xf32>
    %370 = arith.mulf %1, %358 : vector<16x16xf32>
    %371 = arith.mulf %370, %367 : vector<16x16xf32>
    %372 = arith.mulf %344, %361 : vector<16x16xf32>
    %373 = arith.mulf %368, %368 : vector<16x16xf32>
    %374 = arith.mulf %372, %373 : vector<16x16xf32>
    %375 = arith.addf %371, %374 : vector<16x16xf32>
    %376 = arith.mulf %369, %369 : vector<16x16xf32>
    %377 = arith.mulf %2, %376 : vector<16x16xf32>
    %378 = arith.addf %375, %377 : vector<16x16xf32>
    %379 = arith.mulf %294, %378 : vector<16x16xf32>
    %380 = vector.shape_cast %379 : vector<16x16xf32> to vector<1x16x16xf32>
    %cst_107 = arith.constant dense<0.000000e+00> : vector<1xf32>
    %381 = vector.multi_reduction <add>, %380, %cst_107 [1, 2] : vector<1x16x16xf32> to vector<1xf32>
    %382 = vector.shape_cast %381 : vector<1xf32> to vector<1x1x1xf32>
    %383 = vector.extract %382[0, 0, 0] : f32 from vector<1x1x1xf32>
    %384 = vector.broadcast %383 : f32 to vector<1x1xf32>
    %c3_108 = arith.constant 3 : index
    %c0_109 = arith.constant 0 : index
    %c0_110 = arith.constant 0 : index
    %385 = vector.load %arg10[%c3_108, %c0_109, %c0_110] : memref<4x1x1xf32, #tpu.memory_space<vmem>>, vector<1x1x1xf32>
    %386 = vector.shape_cast %385 : vector<1x1x1xf32> to vector<1x1xf32>
    %387 = vector.shape_cast %384 : vector<1x1xf32> to vector<1x1x1xf32>
    tpu.vector_store %arg10[%c3_108, %c0_109, %c0_110], %387 {strides = array<i32>} : memref<4x1x1xf32, #tpu.memory_space<vmem>>, vector<1x1x1xf32>,
    return
  }
  func.func @transform_0(%arg0: i32) -> (i32, i32, i32) {
    %c0_i32 = arith.constant 0 : i32
    %c0_i32_0 = arith.constant 0 : i32
    %c0_i32_1 = arith.constant 0 : i32
    return %arg0, %c0_i32, %c0_i32_0 : i32, i32, i32
  }
  func.func @transform_1(%arg0: i32) -> (i32, i32, i32) {
    %c0_i32 = arith.constant 0 : i32
    %c0_i32_0 = arith.constant 0 : i32
    %c0_i32_1 = arith.constant 0 : i32
    return %arg0, %c0_i32, %c0_i32_0 : i32, i32, i32
  }
  func.func @transform_2(%arg0: i32) -> (i32, i32, i32) {
    %c0_i32 = arith.constant 0 : i32
    %c0_i32_0 = arith.constant 0 : i32
    %c0_i32_1 = arith.constant 0 : i32
    return %arg0, %c0_i32, %c0_i32_0 : i32, i32, i32
  }
  func.func @transform_3(%arg0: i32) -> (i32, i32, i32) {
    %c0_i32 = arith.constant 0 : i32
    %c0_i32_0 = arith.constant 0 : i32
    %c0_i32_1 = arith.constant 0 : i32
    return %arg0, %c0_i32, %c0_i32_0 : i32, i32, i32
  }
  func.func @transform_4(%arg0: i32) -> (i32, i32, i32) {
    %c0_i32 = arith.constant 0 : i32
    %c0_i32_0 = arith.constant 0 : i32
    %c0_i32_1 = arith.constant 0 : i32
    return %arg0, %c0_i32, %c0_i32_0 : i32, i32, i32
  }
  func.func @transform_5(%arg0: i32) -> (i32, i32) {
    %c0_i32 = arith.constant 0 : i32
    %c0_i32_0 = arith.constant 0 : i32
    %c0_i32_1 = arith.constant 0 : i32
    return %c0_i32, %c0_i32_0 : i32, i32
  }
  func.func @transform_6(%arg0: i32) -> (i32, i32) {
    %c0_i32 = arith.constant 0 : i32
    %c0_i32_0 = arith.constant 0 : i32
    %c0_i32_1 = arith.constant 0 : i32
    return %c0_i32, %c0_i32_0 : i32, i32
  }
  func.func @transform_7(%arg0: i32) -> (i32, i32) {
    %c0_i32 = arith.constant 0 : i32
    %c0_i32_0 = arith.constant 0 : i32
    %c0_i32_1 = arith.constant 0 : i32
    return %c0_i32, %c0_i32_0 : i32, i32
  }
  func.func @transform_8(%arg0: i32) -> (i32, i32) {
    %c0_i32 = arith.constant 0 : i32
    %c0_i32_0 = arith.constant 0 : i32
    %c0_i32_1 = arith.constant 0 : i32
    return %c0_i32, %c0_i32_0 : i32, i32
  }
  func.func @transform_9(%arg0: i32) -> (i32, i32, i32) {
    %c0_i32 = arith.constant 0 : i32
    %c0_i32_0 = arith.constant 0 : i32
    %c0_i32_1 = arith.constant 0 : i32
    return %arg0, %c0_i32, %c0_i32_0 : i32, i32, i32
  }
}

</mosaic_0001>

<llo_original>
// kernel: electrostatics_forward.1
$region0: #{electrostatics_forward.1}
  #allocation0 [shape = 'u32[]', space=smem, size = 0x4, offset = 0x4, fixed_abs, tag = 'smem constant byte address 0x4 - core index']
  #allocation1 [shape = 'u32[144,128]{1,0:T(1,128)}', space=vmem, size = 0x12000, scoped, tag = 'internal scratch']
  #allocation2 [shape = 'f32[1,1]{1,0:T(1,128)S(6)}', space=smem, size = 0x200, scoped, tag = 'scoped memory for electrostatics_forward.1']
  %s0 = inlined_call_operand.vmem [shape: s8[8,16,16], index: 0, kind: input, shape index: {}]
  %s1 = inlined_call_operand.vmem [shape: f32[8,16,3], index: 1, kind: input, shape index: {}]
  %s2 = inlined_call_operand.vmem [shape: f32[8,3,16], index: 2, kind: input, shape index: {}]
  %s3 = inlined_call_operand.vmem [shape: f32[8,16,1], index: 3, kind: input, shape index: {}]
  %s4 = inlined_call_operand.vmem [shape: f32[8,1,16], index: 4, kind: input, shape index: {}]
  %s5 = inlined_call_operand.vmem [shape: f32[16,3], index: 5, kind: input, shape index: {}]
  %s6 = inlined_call_operand.vmem [shape: f32[16,16], index: 6, kind: input, shape index: {}]
  %s7 = inlined_call_operand.vmem [shape: f32[16,16], index: 7, kind: input, shape index: {}]
  %s8 = inlined_call_operand.<no memory space> [shape: f32[1,1], index: 8, kind: input, shape index: {}]
  %s9 = inlined_call_operand.vmem [shape: f32[8,1,1], index: 9, kind: output, shape index: {}]
  %s10 = sld [smem:[#allocation0]]
  $region69: #{electrostatics_forward.1} parent=0
    _
  %s12 = ssub.s32 1, %s10
  %s13 = scalar_select 0, %s12, %s10
  %14 = sst [smem:[#allocation2]] %s8
  loop: start=0, step=1, limit=4
  $region2: #{electrostatics_forward.1} parent=0 // loop_pre_header
    _
  $region3: #{electrostatics_forward.1} parent=0 // loop_header
    %s16 = sphi 0, %s20
    %p17 = scmp.ge.s32.totalorder %s16, 4
    %s26 = sphi 0, %s28
    %s29 = sphi 0, %s26
    %s30 = sphi 0, %s29
    %s46 = sphi 0, %s30
    %s52 = sphi 0, %s54
    %s55 = sphi 0, %s52
    %s56 = sphi 0, %s55
    %s72 = sphi 0, %s56
    %s78 = sphi 0, %s80
    %s81 = sphi 0, %s78
    %s82 = sphi 0, %s81
    %s98 = sphi 0, %s82
    %s104 = sphi 0, %s106
    %s107 = sphi 0, %s104
    %s108 = sphi 0, %s107
    %s124 = sphi 0, %s108
    %s130 = sphi 0, %s132
    %s133 = sphi 0, %s130
    %s134 = sphi 0, %s133
    %s150 = sphi 0, %s134
    %s154 = sphi 0, %s154
    %s156 = sphi 0, %s154
    %s157 = sphi 0, %s156
    %s171 = sphi 0, %s157
    %s175 = sphi 0, %s175
    %s177 = sphi 0, %s175
    %s178 = sphi 0, %s177
    %s192 = sphi 0, %s178
    %s196 = sphi 0, %s196
    %s198 = sphi 0, %s196
    %s199 = sphi 0, %s198
    %s213 = sphi 0, %s199
    %s217 = sphi 0, %s217
    %s219 = sphi 0, %s217
    %s220 = sphi 0, %s219
    %s234 = sphi 0, %s220
    %s240 = sphi 0, %s242
    %s243 = sphi 0, %s240
    %s244 = sphi 0, %s243
    %s260 = sphi 0, %s244
  $region4: #{electrostatics_forward.1} parent=0 // loop_header_branch
    %19 = sbr.rel (%p17) target = $region8
  $region5: #{electrostatics_forward.1} parent=0 // loop_body
    %s21 = ssub.s32 %s16, 1
    %s22 = ssub.s32 %s16, 2
    %s23 = sadd.s32 %s16, 1
    %s24 = ssub.s32 %s16, %s23
    %p25 = scmp.eq.s32.totalorder %s24, 0
    %s27 = sadd.s32 %s26, 1
    %s28 = scalar_select %p25, %s26, %s27
    %p31 = pneg %p25
    %p32 = scmp.eq.s32.totalorder %s16, 1
    %p33 = por %p31, %p32
    %p34 = scmp.ne.s32.totalorder %s26, %s29
    %p35 = scmp.eq.s32.totalorder %s16, 0
    %p36 = por %p34, %p35
    %p37 = scmp.ne.s32.totalorder %s26, %s29
    %p38 = scmp.eq.s32.totalorder %s21, 1
    %p39 = por %p37, %p38
    %p40 = scmp.ne.s32.totalorder %s29, %s30
    %p41 = scmp.eq.s32.totalorder %s21, 0
    %p42 = por %p40, %p41
    %p43 = scmp.ne.s32.totalorder %s29, %s30
    %p44 = scmp.eq.s32.totalorder %s22, 1
    %p45 = por %p43, %p44
    %p47 = scmp.ne.s32.totalorder %s30, %s46
    %p48 = scmp.eq.s32.totalorder %s22, 0
    %p49 = por %p47, %p48
    %s50 = ssub.s32 %s16, %s23
    %p51 = scmp.eq.s32.totalorder %s50, 0
    %s53 = sadd.s32 %s52, 1
    %s54 = scalar_select %p51, %s52, %s53
    %p57 = pneg %p51
    %p58 = scmp.eq.s32.totalorder %s16, 1
    %p59 = por %p57, %p58
    %p60 = scmp.ne.s32.totalorder %s52, %s55
    %p61 = scmp.eq.s32.totalorder %s16, 0
    %p62 = por %p60, %p61
    %p63 = scmp.ne.s32.totalorder %s52, %s55
    %p64 = scmp.eq.s32.totalorder %s21, 1
    %p65 = por %p63, %p64
    %p66 = scmp.ne.s32.totalorder %s55, %s56
    %p67 = scmp.eq.s32.totalorder %s21, 0
    %p68 = por %p66, %p67
    %p69 = scmp.ne.s32.totalorder %s55, %s56
    %p70 = scmp.eq.s32.totalorder %s22, 1
    %p71 = por %p69, %p70
    %p73 = scmp.ne.s32.totalorder %s56, %s72
    %p74 = scmp.eq.s32.totalorder %s22, 0
    %p75 = por %p73, %p74
    %s76 = ssub.s32 %s16, %s23
    %p77 = scmp.eq.s32.totalorder %s76, 0
    %s79 = sadd.s32 %s78, 1
    %s80 = scalar_select %p77, %s78, %s79
    %p83 = pneg %p77
    %p84 = scmp.eq.s32.totalorder %s16, 1
    %p85 = por %p83, %p84
    %p86 = scmp.ne.s32.totalorder %s78, %s81
    %p87 = scmp.eq.s32.totalorder %s16, 0
    %p88 = por %p86, %p87
    %p89 = scmp.ne.s32.totalorder %s78, %s81
    %p90 = scmp.eq.s32.totalorder %s21, 1
    %p91 = por %p89, %p90
    %p92 = scmp.ne.s32.totalorder %s81, %s82
    %p93 = scmp.eq.s32.totalorder %s21, 0
    %p94 = por %p92, %p93
    %p95 = scmp.ne.s32.totalorder %s81, %s82
    %p96 = scmp.eq.s32.totalorder %s22, 1
    %p97 = por %p95, %p96
    %p99 = scmp.ne.s32.totalorder %s82, %s98
    %p100 = scmp.eq.s32.totalorder %s22, 0
    %p101 = por %p99, %p100
    %s102 = ssub.s32 %s16, %s23
    %p103 = scmp.eq.s32.totalorder %s102, 0
    %s105 = sadd.s32 %s104, 1
    %s106 = scalar_select %p103, %s104, %s105
    %p109 = pneg %p103
    %p110 = scmp.eq.s32.totalorder %s16, 1
    %p111 = por %p109, %p110
    %p112 = scmp.ne.s32.totalorder %s104, %s107
    %p113 = scmp.eq.s32.totalorder %s16, 0
    %p114 = por %p112, %p113
    %p115 = scmp.ne.s32.totalorder %s104, %s107
    %p116 = scmp.eq.s32.totalorder %s21, 1
    %p117 = por %p115, %p116
    %p118 = scmp.ne.s32.totalorder %s107, %s108
    %p119 = scmp.eq.s32.totalorder %s21, 0
    %p120 = por %p118, %p119
    %p121 = scmp.ne.s32.totalorder %s107, %s108
    %p122 = scmp.eq.s32.totalorder %s22, 1
    %p123 = por %p121, %p122
    %p125 = scmp.ne.s32.totalorder %s108, %s124
    %p126 = scmp.eq.s32.totalorder %s22, 0
    %p127 = por %p125, %p126
    %s128 = ssub.s32 %s16, %s23
    %p129 = scmp.eq.s32.totalorder %s128, 0
    %s131 = sadd.s32 %s130, 1
    %s132 = scalar_select %p129, %s130, %s131
    %p135 = pneg %p129
    %p136 = scmp.eq.s32.totalorder %s16, 1
    %p137 = por %p135, %p136
    %p138 = scmp.ne.s32.totalorder %s130, %s133
    %p139 = scmp.eq.s32.totalorder %s16, 0
    %p140 = por %p138, %p139
    %p141 = scmp.ne.s32.totalorder %s130, %s133
    %p142 = scmp.eq.s32.totalorder %s21, 1
    %p143 = por %p141, %p142
    %p144 = scmp.ne.s32.totalorder %s133, %s134
    %p145 = scmp.eq.s32.totalorder %s21, 0
    %p146 = por %p144, %p145
    %p147 = scmp.ne.s32.totalorder %s133, %s134
    %p148 = scmp.eq.s32.totalorder %s22, 1
    %p149 = por %p147, %p148
    %p151 = scmp.ne.s32.totalorder %s134, %s150
    %p152 = scmp.eq.s32.totalorder %s22, 0
    %p153 = por %p151, %p152
    %s155 = sadd.s32 %s154, 1
    %p158 = scmp.eq.s32.totalorder %s16, 1
    %p159 = scmp.ne.s32.totalorder %s154, %s156
    %p160 = scmp.eq.s32.totalorder %s16, 0
    %p161 = por %p159, %p160
    %p162 = scmp.ne.s32.totalorder %s154, %s156
    %p163 = scmp.eq.s32.totalorder %s21, 1
    %p164 = por %p162, %p163
    %p165 = scmp.ne.s32.totalorder %s156, %s157
    %p166 = scmp.eq.s32.totalorder %s21, 0
    %p167 = por %p165, %p166
    %p168 = scmp.ne.s32.totalorder %s156, %s157
    %p169 = scmp.eq.s32.totalorder %s22, 1
    %p170 = por %p168, %p169
    %p172 = scmp.ne.s32.totalorder %s157, %s171
    %p173 = scmp.eq.s32.totalorder %s22, 0
    %p174 = por %p172, %p173
    %s176 = sadd.s32 %s175, 1
    %p179 = scmp.eq.s32.totalorder %s16, 1
    %p180 = scmp.ne.s32.totalorder %s175, %s177
    %p181 = scmp.eq.s32.totalorder %s16, 0
    %p182 = por %p180, %p181
    %p183 = scmp.ne.s32.totalorder %s175, %s177
    %p184 = scmp.eq.s32.totalorder %s21, 1
    %p185 = por %p183, %p184
    %p186 = scmp.ne.s32.totalorder %s177, %s178
    %p187 = scmp.eq.s32.totalorder %s21, 0
    %p188 = por %p186, %p187
    %p189 = scmp.ne.s32.totalorder %s177, %s178
    %p190 = scmp.eq.s32.totalorder %s22, 1
    %p191 = por %p189, %p190
    %p193 = scmp.ne.s32.totalorder %s178, %s192
    %p194 = scmp.eq.s32.totalorder %s22, 0
    %p195 = por %p193, %p194
    %s197 = sadd.s32 %s196, 1
    %p200 = scmp.eq.s32.totalorder %s16, 1
    %p201 = scmp.ne.s32.totalorder %s196, %s198
    %p202 = scmp.eq.s32.totalorder %s16, 0
    %p203 = por %p201, %p202
    %p204 = scmp.ne.s32.totalorder %s196, %s198
    %p205 = scmp.eq.s32.totalorder %s21, 1
    %p206 = por %p204, %p205
    %p207 = scmp.ne.s32.totalorder %s198, %s199
    %p208 = scmp.eq.s32.totalorder %s21, 0
    %p209 = por %p207, %p208
    %p210 = scmp.ne.s32.totalorder %s198, %s199
    %p211 = scmp.eq.s32.totalorder %s22, 1
    %p212 = por %p210, %p211
    %p214 = scmp.ne.s32.totalorder %s199, %s213
    %p215 = scmp.eq.s32.totalorder %s22, 0
    %p216 = por %p214, %p215
    %s218 = sadd.s32 %s217, 1
    %p221 = scmp.eq.s32.totalorder %s16, 1
    %p222 = scmp.ne.s32.totalorder %s217, %s219
    %p223 = scmp.eq.s32.totalorder %s16, 0
    %p224 = por %p222, %p223
    %p225 = scmp.ne.s32.totalorder %s217, %s219
    %p226 = scmp.eq.s32.totalorder %s21, 1
    %p227 = por %p225, %p226
    %p228 = scmp.ne.s32.totalorder %s219, %s220
    %p229 = scmp.eq.s32.totalorder %s21, 0
    %p230 = por %p228, %p229
    %p231 = scmp.ne.s32.totalorder %s219, %s220
    %p232 = scmp.eq.s32.totalorder %s22, 1
    %p233 = por %p231, %p232
    %p235 = scmp.ne.s32.totalorder %s220, %s234
    %p236 = scmp.eq.s32.totalorder %s22, 0
    %p237 = por %p235, %p236
    %s238 = ssub.s32 %s16, %s23
    %p239 = scmp.eq.s32.totalorder %s238, 0
    %s241 = sadd.s32 %s240, 1
    %s242 = scalar_select %p239, %s240, %s241
    %p245 = pneg %p239
    %p246 = scmp.eq.s32.totalorder %s16, 1
    %p247 = por %p245, %p246
    %p248 = scmp.ne.s32.totalorder %s240, %s243
    %p249 = scmp.eq.s32.totalorder %s16, 0
    %p250 = por %p248, %p249
    %p251 = scmp.ne.s32.totalorder %s240, %s243
    %p252 = scmp.eq.s32.totalorder %s21, 1
    %p253 = por %p251, %p252
    %p254 = scmp.ne.s32.totalorder %s243, %s244
    %p255 = scmp.eq.s32.totalorder %s21, 0
    %p256 = por %p254, %p255
    %p257 = scmp.ne.s32.totalorder %s243, %s244
    %p258 = scmp.eq.s32.totalorder %s22, 1
    %p259 = por %p257, %p258
    %p261 = scmp.ne.s32.totalorder %s244, %s260
    %p262 = scmp.eq.s32.totalorder %s22, 0
    %p263 = por %p261, %p262
    %p264 = scmp.le.s32.totalorder 1, %s16
    %p265 = scmp.lt.s32.totalorder %s16, 3
    %p266 = pnand %p264, %p265
    %p267 = pneg %p266
    // Predicated region
    $region9: #{electrostatics_forward.1} parent=5 // pred_check
      _
    $region10: #{electrostatics_forward.1} parent=5 // pred_check_branch
      %269 = sbr.rel (%p266) target = $region12
    $region11: #{electrostatics_forward.1} parent=5 // pred_region
      %s270 = ssub.s32 %s16, 1
      // Predicated region
      $region13: #{electrostatics_forward.1} parent=11 // pred_check
        %p271 = pneg %p167
      $region14: #{electrostatics_forward.1} parent=11 // pred_check_branch
        %273 = sbr.rel (%p271) target = $region16
      $region15: #{electrostatics_forward.1} parent=11 // pred_region
        _
      $region16: #{electrostatics_forward.1} parent=11 // pred_fallthru
        _
      // Predicated region
      $region17: #{electrostatics_forward.1} parent=11 // pred_check
        %p274 = pneg %p188
      $region18: #{electrostatics_forward.1} parent=11 // pred_check_branch
        %276 = sbr.rel (%p274) target = $region20
      $region19: #{electrostatics_forward.1} parent=11 // pred_region
        _
      $region20: #{electrostatics_forward.1} parent=11 // pred_fallthru
        _
      // Predicated region
      $region21: #{electrostatics_forward.1} parent=11 // pred_check
        %p277 = pneg %p209
      $region22: #{electrostatics_forward.1} parent=11 // pred_check_branch
        %279 = sbr.rel (%p277) target = $region24
      $region23: #{electrostatics_forward.1} parent=11 // pred_region
        _
      $region24: #{electrostatics_forward.1} parent=11 // pred_fallthru
        _
      // Predicated region
      $region25: #{electrostatics_forward.1} parent=11 // pred_check
        %p280 = pneg %p230
      $region26: #{electrostatics_forward.1} parent=11 // pred_check_branch
        %282 = sbr.rel (%p280) target = $region28
      $region27: #{electrostatics_forward.1} parent=11 // pred_region
        _
      $region28: #{electrostatics_forward.1} parent=11 // pred_fallthru
        _
    $region12: #{electrostatics_forward.1} parent=5 // pred_fallthru
      _
    %p283 = scmp.lt.s32.totalorder %s16, 2
    // Predicated region
    $region29: #{electrostatics_forward.1} parent=5 // pred_check
      %p284 = pneg %p283
    $region30: #{electrostatics_forward.1} parent=5 // pred_check_branch
      %286 = sbr.rel (%p284) target = $region32
    $region31: #{electrostatics_forward.1} parent=5 // pred_region
      // Predicated region
      $region33: #{electrostatics_forward.1} parent=31 // pred_check
        %p287 = pneg %p36
      $region34: #{electrostatics_forward.1} parent=31 // pred_check_branch
        %289 = sbr.rel (%p287) target = $region36
      $region35: #{electrostatics_forward.1} parent=31 // pred_region
        %s290 = smul.u32 4, %s16
        %p291 = scmp.lt.s32.totalorder %s290, 7
        %s292 = scalar_select %p291, %s290, 7
        %s293 = smul.addr %s292, 2
        %s294 = smul.addr %s293, 2
        %s295 = scalar_lea.vmem %s0, %s294
        %s296 = smul.u32 4, %s16
      $region36: #{electrostatics_forward.1} parent=31 // pred_fallthru
        _
      // Predicated region
      $region37: #{electrostatics_forward.1} parent=31 // pred_check
        %p297 = pneg %p62
      $region38: #{electrostatics_forward.1} parent=31 // pred_check_branch
        %299 = sbr.rel (%p297) target = $region40
      $region39: #{electrostatics_forward.1} parent=31 // pred_region
        %s300 = smul.u32 4, %s16
        %p301 = scmp.lt.s32.totalorder %s300, 7
        %s302 = scalar_select %p301, %s300, 7
        %s303 = smul.addr %s302, 2
        %s304 = smul.addr %s303, 8
        %s305 = scalar_lea.vmem %s1, %s304
        %s306 = smul.u32 4, %s16
      $region40: #{electrostatics_forward.1} parent=31 // pred_fallthru
        _
      // Predicated region
      $region41: #{electrostatics_forward.1} parent=31 // pred_check
        %p307 = pneg %p88
      $region42: #{electrostatics_forward.1} parent=31 // pred_check_branch
        %309 = sbr.rel (%p307) target = $region44
      $region43: #{electrostatics_forward.1} parent=31 // pred_region
        %s310 = smul.u32 4, %s16
        %p311 = scmp.lt.s32.totalorder %s310, 7
        %s312 = scalar_select %p311, %s310, 7
        %s313 = smul.addr %s312, 4
        %s314 = scalar_lea.vmem %s2, %s313
        %s315 = smul.u32 4, %s16
      $region44: #{electrostatics_forward.1} parent=31 // pred_fallthru
        _
      // Predicated region
      $region45: #{electrostatics_forward.1} parent=31 // pred_check
        %p316 = pneg %p114
      $region46: #{electrostatics_forward.1} parent=31 // pred_check_branch
        %318 = sbr.rel (%p316) target = $region48
      $region47: #{electrostatics_forward.1} parent=31 // pred_region
        %s319 = smul.u32 4, %s16
        %p320 = scmp.lt.s32.totalorder %s319, 7
        %s321 = scalar_select %p320, %s319, 7
        %s322 = smul.addr %s321, 2
        %s323 = smul.addr %s322, 8
        %s324 = scalar_lea.vmem %s3, %s323
        %s325 = smul.u32 4, %s16
      $region48: #{electrostatics_forward.1} parent=31 // pred_fallthru
        _
      // Predicated region
      $region49: #{electrostatics_forward.1} parent=31 // pred_check
        %p326 = pneg %p140
      $region50: #{electrostatics_forward.1} parent=31 // pred_check_branch
        %328 = sbr.rel (%p326) target = $region52
      $region51: #{electrostatics_forward.1} parent=31 // pred_region
        %s329 = smul.u32 4, %s16
        %p330 = scmp.lt.s32.totalorder %s329, 7
        %s331 = scalar_select %p330, %s329, 7
        %s332 = scalar_lea.vmem %s4, %s331
        %s333 = smul.u32 4, %s16
      $region52: #{electrostatics_forward.1} parent=31 // pred_fallthru
        _
    $region32: #{electrostatics_forward.1} parent=5 // pred_fallthru
      _
    %p334 = scmp.le.s32.totalorder 1, %s16
    %p335 = scmp.lt.s32.totalorder %s16, 3
    %p336 = pnand %p334, %p335
    %p337 = pneg %p336
    // Predicated region
    $region53: #{electrostatics_forward.1} parent=5 // pred_check
      _
    $region54: #{electrostatics_forward.1} parent=5 // pred_check_branch
      %339 = sbr.rel (%p336) target = $region56
    $region55: #{electrostatics_forward.1} parent=5 // pred_region
      %s340 = ssub.s32 %s16, 1
      %s341 = smul.u32 4, %s21
      %p342 = scmp.lt.s32.totalorder %s341, 7
      %s343 = scalar_select %p342, %s341, 7
      %s344 = smul.addr %s343, 2
      %s345 = smul.addr %s344, 2
      %s346 = scalar_lea.vmem %s0, %s345
      %p347 = pneg %p42
      %p348 = pneg %p39
      %s349 = smul.u32 4, %s21
      %p350 = scmp.lt.s32.totalorder %s349, 7
      %s351 = scalar_select %p350, %s349, 7
      %s352 = smul.addr %s351, 2
      %s353 = smul.addr %s352, 8
      %s354 = scalar_lea.vmem %s1, %s353
      %p355 = pneg %p68
      %p356 = pneg %p65
      %s357 = smul.u32 4, %s21
      %p358 = scmp.lt.s32.totalorder %s357, 7
      %s359 = scalar_select %p358, %s357, 7
      %s360 = smul.addr %s359, 4
      %s361 = scalar_lea.vmem %s2, %s360
      %p362 = pneg %p94
      %p363 = pneg %p91
      %s364 = smul.u32 4, %s21
      %p365 = scmp.lt.s32.totalorder %s364, 7
      %s366 = scalar_select %p365, %s364, 7
      %s367 = smul.addr %s366, 2
      %s368 = smul.addr %s367, 8
      %s369 = scalar_lea.vmem %s3, %s368
      %p370 = pneg %p120
      %p371 = pneg %p117
      %s372 = smul.u32 4, %s21
      %p373 = scmp.lt.s32.totalorder %s372, 7
      %s374 = scalar_select %p373, %s372, 7
      %s375 = scalar_lea.vmem %s4, %s374
      %p376 = pneg %p146
      %p377 = pneg %p143
      %p378 = pneg %p167
      %p379 = pneg %p164
      %p380 = pneg %p188
      %p381 = pneg %p185
      %p382 = pneg %p209
      %p383 = pneg %p206
      %p384 = pneg %p230
      %p385 = pneg %p227
      %p386 = pneg %p256
      %p387 = pneg %p253
      %s388 = smul.u32 4, %s21
      %p389 = scmp.lt.s32.totalorder %s388, 7
      %s390 = scalar_select %p389, %s388, 7
      %s391 = scalar_lea.vmem %s9, %s390
      %s392 = smul.u32 4, %s21
      %p393 = scmp.lt.s32.totalorder %s392, 7
      %s394 = scalar_select %p393, %s392, 7
      %s395 = smul.addr %s394, 2
      %s396 = smul.addr %s395, 2
      %s397 = scalar_lea.vmem %s0, %s396
      %s398 = smul.u32 4, %s21
      %s399 = smul.u32 4, %s21
      %p400 = scmp.lt.s32.totalorder %s399, 7
      %s401 = scalar_select %p400, %s399, 7
      %s402 = smul.addr %s401, 2
      %s403 = smul.addr %s402, 8
      %s404 = scalar_lea.vmem %s1, %s403
      %s405 = smul.u32 4, %s21
      %s406 = smul.u32 4, %s21
      %p407 = scmp.lt.s32.totalorder %s406, 7
      %s408 = scalar_select %p407, %s406, 7
      %s409 = smul.addr %s408, 4
      %s410 = scalar_lea.vmem %s2, %s409
      %s411 = smul.u32 4, %s21
      %s412 = smul.u32 4, %s21
      %p413 = scmp.lt.s32.totalorder %s412, 7
      %s414 = scalar_select %p413, %s412, 7
      %s415 = smul.addr %s414, 2
      %s416 = smul.addr %s415, 8
      %s417 = scalar_lea.vmem %s3, %s416
      %s418 = smul.u32 4, %s21
      %s419 = smul.u32 4, %s21
      %p420 = scmp.lt.s32.totalorder %s419, 7
      %s421 = scalar_select %p420, %s419, 7
      %s422 = scalar_lea.vmem %s4, %s421
      %s423 = smul.u32 4, %s21
      %s424 = smul.u32 4, %s21
      %p425 = scmp.lt.s32.totalorder %s424, 7
      %s426 = scalar_select %p425, %s424, 7
      %s427 = scalar_lea.vmem %s9, %s426
      %s428 = smul.u32 4, %s21
      %s429 = sld [smem:[#allocation2]]
      %v430 = vld [vmem:[%s6] sm:$0xff]
      %v431 = vld [vmem:[%s6 + $0x8] sm:$0xff]
      %v432 = vld [vmem:[%s7] sm:$0xff]
      %v433 = vld [vmem:[%s7 + $0x8] sm:$0xff]
      %v434 = vld [vmem:[%s5] sm:$0xff]
      %v435 = vld [vmem:[%s5 + $0x8] sm:$0xff]
      %v436 = vld [vmem:[%s397] sm:$0x3]
      %v437 = vld [vmem:[%s397 + $0x2] sm:$0x3]
      %v438 = vunpack.c.0.s8 %v436
      %v439 = vunpack.c.0.s8 %v437
      %v440 = vcvt.s32.f32 %v438
      %v441 = vcvt.s32.f32 %v439
      %v442 = vld [vmem:[%s404] sm:$0xff]
      %v443 = vld [vmem:[%s404 + $0x8] sm:$0xff]
      %v444 = vld [vmem:[%s410] sm:$0x7]
      %v445 = vld [vmem:[%s417] sm:$0xff]
      %v446 = vld [vmem:[%s417 + $0x8] sm:$0xff]
      %v447 = vld [vmem:[%s422] sm:$0x1]
      %v448 = vlaneseq
      %v449 = vshrl.u32 %v448, 7
      %v450 = vsub.s32 0, %v449
      %v451 = vrot.slane %v444, %v450
      %453 = vset.pattern.permute.xlu0 0
      %454 = vperm.xlu0 %453, %v442
      %v455 = vpop.permute.xlu0 %454
      %458 = vset.pattern.permute.xlu0 0
      %459 = vperm.xlu0 %458, %v443
      %v460 = vpop.permute.xlu0 %459
      %v462 = vsub.f32 %v451, %v455
      %v463 = vsub.f32 %v451, %v460
      %v464 = vadd.f32 %v462, 1e-06
      %v465 = vadd.f32 %v463, 1e-06
      %v466 = vmul.f32 %v462, %v462
      %v467 = vmul.f32 %v463, %v463
      %v468 = vmul.f32 %v464, %v464
      %v469 = vmul.f32 %v465, %v465
      %471 = vset.pattern.permute.xlu0 0
      %472 = vperm.xlu0 %471, %v434
      %v473 = vpop.permute.xlu0 %472
      %476 = vset.pattern.permute.xlu0 0
      %477 = vperm.xlu0 %476, %v435
      %v478 = vpop.permute.xlu0 %477
      %v480 = vmul.f32 %v464, %v473
      %v481 = vmul.f32 %v465, %v478
      %v482 = vlaneseq
      %v483 = vshrl.u32 %v482, 7
      %v484 = vsub.s32 1, %v483
      %v485 = vrot.slane %v444, %v484
      %486 = vset.pattern.permute.xlu0 1
      %487 = vperm.xlu0 %486, %v442
      %v488 = vpop.permute.xlu0 %487
      %490 = vset.pattern.permute.xlu0 1
      %491 = vperm.xlu0 %490, %v443
      %v492 = vpop.permute.xlu0 %491
      %v494 = vsub.f32 %v485, %v488
      %v495 = vsub.f32 %v485, %v492
      %v496 = vadd.f32 %v494, 1e-06
      %v497 = vadd.f32 %v495, 1e-06
      %v498 = vmul.f32 %v494, %v494
      %v499 = vmul.f32 %v495, %v495
      %v500 = vadd.f32 %v466, %v498
      %v501 = vadd.f32 %v467, %v499
      %v502 = vmul.f32 %v496, %v496
      %v503 = vmul.f32 %v497, %v497
      %v504 = vadd.f32 %v468, %v502
      %v505 = vadd.f32 %v469, %v503
      %506 = vset.pattern.permute.xlu0 1
      %507 = vperm.xlu0 %506, %v434
      %v508 = vpop.permute.xlu0 %507
      %510 = vset.pattern.permute.xlu0 1
      %511 = vperm.xlu0 %510, %v435
      %v512 = vpop.permute.xlu0 %511
      %v514 = vmul.f32 %v496, %v508
      %v515 = vmul.f32 %v497, %v512
      %v516 = vadd.f32 %v480, %v514
      %v517 = vadd.f32 %v481, %v515
      %v518 = vlaneseq
      %v519 = vshrl.u32 %v518, 7
      %v520 = vsub.s32 2, %v519
      %v521 = vrot.slane %v444, %v520
      %522 = vset.pattern.permute.xlu0 2
      %523 = vperm.xlu0 %522, %v442
      %v524 = vpop.permute.xlu0 %523
      %526 = vset.pattern.permute.xlu0 2
      %527 = vperm.xlu0 %526, %v443
      %v528 = vpop.permute.xlu0 %527
      %v530 = vsub.f32 %v521, %v524
      %v531 = vsub.f32 %v521, %v528
      %v532 = vadd.f32 %v530, 1e-06
      %v533 = vadd.f32 %v531, 1e-06
      %v534 = vmul.f32 %v530, %v530
      %v535 = vmul.f32 %v531, %v531
      %v536 = vadd.f32 %v500, %v534
      %v537 = vadd.f32 %v501, %v535
      %v538 = vmul.f32 %v532, %v532
      %v539 = vmul.f32 %v533, %v533
      %v540 = vadd.f32 %v504, %v538
      %v541 = vadd.f32 %v505, %v539
      %542 = vset.pattern.permute.xlu0 2
      %543 = vperm.xlu0 %542, %v434
      %v544 = vpop.permute.xlu0 %543
      %546 = vset.pattern.permute.xlu0 2
      %547 = vperm.xlu0 %546, %v435
      %v548 = vpop.permute.xlu0 %547
      %v550 = vmul.f32 %v532, %v544
      %v551 = vmul.f32 %v533, %v548
      %v552 = vadd.f32 %v516, %v550
      %v553 = vadd.f32 %v517, %v551
      %v554 = vadd.f32 %v536, 3e-06
      %v555 = vadd.f32 %v537, 3e-06
      %v556 = vrsqrt.pop %v554
      %v557 = vmul.f32 %v554, %v556
      %vm558 = vcmp.eq.f32.partialorder %v554, inf
      %v559 = vsel %vm558, %v554, %v557
      %vm560 = vcmp.eq.f32.partialorder %v554, 0.0
      %v561 = vand.u32 %v554, 2147483648
      %v562 = vsel %vm560, %v561, %v559
      %v563 = vrsqrt.pop %v555
      %v564 = vmul.f32 %v555, %v563
      %vm565 = vcmp.eq.f32.partialorder %v555, inf
      %v566 = vsel %vm565, %v555, %v564
      %vm567 = vcmp.eq.f32.partialorder %v555, 0.0
      %v568 = vand.u32 %v555, 2147483648
      %v569 = vsel %vm567, %v568, %v566
      %v570 = vadd.f32 %v562, 1e-06
      %v571 = vadd.f32 %v569, 1e-06
      %v572 = vrcp.pop %v570
      %v573 = vrcp.pop %v571
      %v574 = vmul.f32 %v570, %v572
      %v575 = vmul.f32 %v571, %v573
      %v576 = vsub.f32 2.0, %v574
      %v577 = vsub.f32 2.0, %v575
      %v578 = vmul.f32 %v572, %v576
      %v579 = vmul.f32 %v573, %v577
      %v580 = vmul.f32 %v570, %v578
      %v581 = vmul.f32 %v571, %v579
      %v582 = vsub.f32 2.0, %v580
      %v583 = vsub.f32 2.0, %v581
      %v584 = vmul.f32 %v578, %v582
      %v585 = vmul.f32 %v579, %v583
      %v586 = vmax.f32 %v540, 1e-24
      %v587 = vmax.f32 %v541, 1e-24
      %v588 = vrsqrt.pop %v586
      %v589 = vrsqrt.pop %v587
      %v591 = vlaneseq
      %v592 = vshrl.u32 %v591, 7
      %v593 = vsub.s32 0, %v592
      %v594 = vrot.slane %v447, %v593
      %597 = vset.pattern.permute.xlu0 0
      %598 = vperm.xlu0 %597, %v445
      %v599 = vpop.permute.xlu0 %598
      %602 = vset.pattern.permute.xlu0 0
      %603 = vperm.xlu0 %602, %v446
      %v604 = vpop.permute.xlu0 %603
      %v606 = vadd.f32 %v594, %v599
      %v607 = vadd.f32 %v594, %v604
      %v608 = vstv %s429
      %v609 = vmul.f32 %v584, %v608
      %v610 = vmul.f32 %v585, %v608
      %v611 = vadd.f32 %v606, %v609
      %v612 = vadd.f32 %v607, %v610
      %v613 = vmul.f32 %v584, %v584
      %v614 = vmul.f32 %v585, %v585
      %v615 = vmul.f32 %v613, %v584
      %v616 = vmul.f32 %v614, %v585
      %v617 = vmul.f32 %v430, %v584
      %v618 = vmul.f32 %v431, %v585
      %v619 = vmul.f32 %v617, %v611
      %v620 = vmul.f32 %v618, %v612
      %v621 = vmul.f32 %v552, %v588
      %v622 = vmul.f32 %v553, %v589
      %v623 = vmul.f32 %v613, %v613
      %v624 = vmul.f32 %v614, %v614
      %v625 = vmul.f32 %v621, %v623
      %v626 = vmul.f32 %v622, %v624
      %v627 = vadd.f32 %v619, %v625
      %v628 = vadd.f32 %v620, %v626
      %v629 = vmul.f32 %v615, %v615
      %v630 = vmul.f32 %v616, %v616
      %v631 = vmul.f32 %v432, %v629
      %v632 = vmul.f32 %v433, %v630
      %v633 = vadd.f32 %v627, %v631
      %v634 = vadd.f32 %v628, %v632
      %v635 = vmul.f32 %v440, %v633
      %v636 = vmul.f32 %v441, %v634
      %vm637 = vcmask 130048
      %v638 = vsel %vm637, %v635, 0.0
      %v639 = vsel %vm637, %v636, 0.0
      %v640 = vadd.f32 %v638, %v639
      %641 = vadd.xlane.f32.xlu0 %v640
      %v642 = vpop.xlane.xlu0 %641
      %v643 = vrot.slane %v642, 4
      %v644 = vadd.f32 %v642, %v643
      %v645 = vrot.slane %v644, 2
      %v646 = vadd.f32 %v644, %v645
      %v647 = vrot.slane %v646, 1
      %v648 = vadd.f32 %v646, %v647
      %s649 = vtos %v648
      %v650 = vstv %s649
      %vm651 = vcmask 0
      %652 = vst.msk [vmem:[%s427] sm:$0x1] %vm651, %v650
      %s653 = scalar_lea.vmem %s397, 4
      %v654 = vld [vmem:[%s653] sm:$0x3]
      %v655 = vld [vmem:[%s653 + $0x2] sm:$0x3]
      %v656 = vunpack.c.0.s8 %v654
      %v657 = vunpack.c.0.s8 %v655
      %v658 = vcvt.s32.f32 %v656
      %v659 = vcvt.s32.f32 %v657
      %s660 = scalar_lea.vmem %s404, 16
      %v661 = vld [vmem:[%s660] sm:$0xff]
      %v662 = vld [vmem:[%s660 + $0x8] sm:$0xff]
      %s663 = scalar_lea.vmem %s410, 4
      %v664 = vld [vmem:[%s663] sm:$0x7]
      %s665 = scalar_lea.vmem %s417, 16
      %v666 = vld [vmem:[%s665] sm:$0xff]
      %v667 = vld [vmem:[%s665 + $0x8] sm:$0xff]
      %s668 = scalar_lea.vmem %s422, 1
      %v669 = vld [vmem:[%s668] sm:$0x1]
      %v670 = vlaneseq
      %v671 = vshrl.u32 %v670, 7
      %v672 = vsub.s32 0, %v671
      %v673 = vrot.slane %v664, %v672
      %675 = vset.pattern.permute.xlu0 0
      %676 = vperm.xlu0 %675, %v661
      %v677 = vpop.permute.xlu0 %676
      %680 = vset.pattern.permute.xlu0 0
      %681 = vperm.xlu0 %680, %v662
      %v682 = vpop.permute.xlu0 %681
      %v684 = vsub.f32 %v673, %v677
      %v685 = vsub.f32 %v673, %v682
      %v686 = vadd.f32 %v684, 1e-06
      %v687 = vadd.f32 %v685, 1e-06
      %v688 = vmul.f32 %v684, %v684
      %v689 = vmul.f32 %v685, %v685
      %v690 = vmul.f32 %v686, %v686
      %v691 = vmul.f32 %v687, %v687
      %v692 = vmul.f32 %v686, %v473
      %v693 = vmul.f32 %v687, %v478
      %v694 = vlaneseq
      %v695 = vshrl.u32 %v694, 7
      %v696 = vsub.s32 1, %v695
      %v697 = vrot.slane %v664, %v696
      %698 = vset.pattern.permute.xlu0 1
      %699 = vperm.xlu0 %698, %v661
      %v700 = vpop.permute.xlu0 %699
      %702 = vset.pattern.permute.xlu0 1
      %703 = vperm.xlu0 %702, %v662
      %v704 = vpop.permute.xlu0 %703
      %v706 = vsub.f32 %v697, %v700
      %v707 = vsub.f32 %v697, %v704
      %v708 = vadd.f32 %v706, 1e-06
      %v709 = vadd.f32 %v707, 1e-06
      %v710 = vmul.f32 %v706, %v706
      %v711 = vmul.f32 %v707, %v707
      %v712 = vadd.f32 %v688, %v710
      %v713 = vadd.f32 %v689, %v711
      %v714 = vmul.f32 %v708, %v708
      %v715 = vmul.f32 %v709, %v709
      %v716 = vadd.f32 %v690, %v714
      %v717 = vadd.f32 %v691, %v715
      %v718 = vmul.f32 %v708, %v508
      %v719 = vmul.f32 %v709, %v512
      %v720 = vadd.f32 %v692, %v718
      %v721 = vadd.f32 %v693, %v719
      %v722 = vlaneseq
      %v723 = vshrl.u32 %v722, 7
      %v724 = vsub.s32 2, %v723
      %v725 = vrot.slane %v664, %v724
      %726 = vset.pattern.permute.xlu0 2
      %727 = vperm.xlu0 %726, %v661
      %v728 = vpop.permute.xlu0 %727
      %730 = vset.pattern.permute.xlu0 2
      %731 = vperm.xlu0 %730, %v662
      %v732 = vpop.permute.xlu0 %731
      %v734 = vsub.f32 %v725, %v728
      %v735 = vsub.f32 %v725, %v732
      %v736 = vadd.f32 %v734, 1e-06
      %v737 = vadd.f32 %v735, 1e-06
      %v738 = vmul.f32 %v734, %v734
      %v739 = vmul.f32 %v735, %v735
      %v740 = vadd.f32 %v712, %v738
      %v741 = vadd.f32 %v713, %v739
      %v742 = vmul.f32 %v736, %v736
      %v743 = vmul.f32 %v737, %v737
      %v744 = vadd.f32 %v716, %v742
      %v745 = vadd.f32 %v717, %v743
      %v746 = vmul.f32 %v736, %v544
      %v747 = vmul.f32 %v737, %v548
      %v748 = vadd.f32 %v720, %v746
      %v749 = vadd.f32 %v721, %v747
      %v750 = vadd.f32 %v740, 3e-06
      %v751 = vadd.f32 %v741, 3e-06
      %v752 = vrsqrt.pop %v750
      %v753 = vmul.f32 %v750, %v752
      %vm754 = vcmp.eq.f32.partialorder %v750, inf
      %v755 = vsel %vm754, %v750, %v753
      %vm756 = vcmp.eq.f32.partialorder %v750, 0.0
      %v757 = vand.u32 %v750, 2147483648
      %v758 = vsel %vm756, %v757, %v755
      %v759 = vrsqrt.pop %v751
      %v760 = vmul.f32 %v751, %v759
      %vm761 = vcmp.eq.f32.partialorder %v751, inf
      %v762 = vsel %vm761, %v751, %v760
      %vm763 = vcmp.eq.f32.partialorder %v751, 0.0
      %v764 = vand.u32 %v751, 2147483648
      %v765 = vsel %vm763, %v764, %v762
      %v766 = vadd.f32 %v758, 1e-06
      %v767 = vadd.f32 %v765, 1e-06
      %v768 = vrcp.pop %v766
      %v769 = vrcp.pop %v767
      %v770 = vmul.f32 %v766, %v768
      %v771 = vmul.f32 %v767, %v769
      %v772 = vsub.f32 2.0, %v770
      %v773 = vsub.f32 2.0, %v771
      %v774 = vmul.f32 %v768, %v772
      %v775 = vmul.f32 %v769, %v773
      %v776 = vmul.f32 %v766, %v774
      %v777 = vmul.f32 %v767, %v775
      %v778 = vsub.f32 2.0, %v776
      %v779 = vsub.f32 2.0, %v777
      %v780 = vmul.f32 %v774, %v778
      %v781 = vmul.f32 %v775, %v779
      %v782 = vmax.f32 %v744, 1e-24
      %v783 = vmax.f32 %v745, 1e-24
      %v784 = vrsqrt.pop %v782
      %v785 = vrsqrt.pop %v783
      %v787 = vlaneseq
      %v788 = vshrl.u32 %v787, 7
      %v789 = vsub.s32 0, %v788
      %v790 = vrot.slane %v669, %v789
      %793 = vset.pattern.permute.xlu0 0
      %794 = vperm.xlu0 %793, %v666
      %v795 = vpop.permute.xlu0 %794
      %798 = vset.pattern.permute.xlu0 0
      %799 = vperm.xlu0 %798, %v667
      %v800 = vpop.permute.xlu0 %799
      %v802 = vadd.f32 %v790, %v795
      %v803 = vadd.f32 %v790, %v800
      %v804 = vmul.f32 %v780, %v608
      %v805 = vmul.f32 %v781, %v608
      %v806 = vadd.f32 %v802, %v804
      %v807 = vadd.f32 %v803, %v805
      %v808 = vmul.f32 %v780, %v780
      %v809 = vmul.f32 %v781, %v781
      %v810 = vmul.f32 %v808, %v780
      %v811 = vmul.f32 %v809, %v781
      %v812 = vmul.f32 %v430, %v780
      %v813 = vmul.f32 %v431, %v781
      %v814 = vmul.f32 %v812, %v806
      %v815 = vmul.f32 %v813, %v807
      %v816 = vmul.f32 %v748, %v784
      %v817 = vmul.f32 %v749, %v785
      %v818 = vmul.f32 %v808, %v808
      %v819 = vmul.f32 %v809, %v809
      %v820 = vmul.f32 %v816, %v818
      %v821 = vmul.f32 %v817, %v819
      %v822 = vadd.f32 %v814, %v820
      %v823 = vadd.f32 %v815, %v821
      %v824 = vmul.f32 %v810, %v810
      %v825 = vmul.f32 %v811, %v811
      %v826 = vmul.f32 %v432, %v824
      %v827 = vmul.f32 %v433, %v825
      %v828 = vadd.f32 %v822, %v826
      %v829 = vadd.f32 %v823, %v827
      %v830 = vmul.f32 %v658, %v828
      %v831 = vmul.f32 %v659, %v829
      %v832 = vsel %vm637, %v830, 0.0
      %v833 = vsel %vm637, %v831, 0.0
      %v834 = vadd.f32 %v832, %v833
      %835 = vadd.xlane.f32.xlu0 %v834
      %v836 = vpop.xlane.xlu0 %835
      %v837 = vrot.slane %v836, 4
      %v838 = vadd.f32 %v836, %v837
      %v839 = vrot.slane %v838, 2
      %v840 = vadd.f32 %v838, %v839
      %v841 = vrot.slane %v840, 1
      %v842 = vadd.f32 %v840, %v841
      %s843 = vtos %v842
      %v844 = vstv %s843
      %s845 = scalar_lea.vmem %s427, 1
      %846 = vst.msk [vmem:[%s845] sm:$0x1] %vm651, %v844
      %s847 = scalar_lea.vmem %s397, 8
      %v848 = vld [vmem:[%s847] sm:$0x3]
      %v849 = vld [vmem:[%s847 + $0x2] sm:$0x3]
      %v850 = vunpack.c.0.s8 %v848
      %v851 = vunpack.c.0.s8 %v849
      %v852 = vcvt.s32.f32 %v850
      %v853 = vcvt.s32.f32 %v851
      %s854 = scalar_lea.vmem %s404, 32
      %v855 = vld [vmem:[%s854] sm:$0xff]
      %v856 = vld [vmem:[%s854 + $0x8] sm:$0xff]
      %s857 = scalar_lea.vmem %s410, 8
      %v858 = vld [vmem:[%s857] sm:$0x7]
      %s859 = scalar_lea.vmem %s417, 32
      %v860 = vld [vmem:[%s859] sm:$0xff]
      %v861 = vld [vmem:[%s859 + $0x8] sm:$0xff]
      %s862 = scalar_lea.vmem %s422, 2
      %v863 = vld [vmem:[%s862] sm:$0x1]
      %v864 = vlaneseq
      %v865 = vshrl.u32 %v864, 7
      %v866 = vsub.s32 0, %v865
      %v867 = vrot.slane %v858, %v866
      %869 = vset.pattern.permute.xlu0 0
      %870 = vperm.xlu0 %869, %v855
      %v871 = vpop.permute.xlu0 %870
      %874 = vset.pattern.permute.xlu0 0
      %875 = vperm.xlu0 %874, %v856
      %v876 = vpop.permute.xlu0 %875
      %v878 = vsub.f32 %v867, %v871
      %v879 = vsub.f32 %v867, %v876
      %v880 = vadd.f32 %v878, 1e-06
      %v881 = vadd.f32 %v879, 1e-06
      %v882 = vmul.f32 %v878, %v878
      %v883 = vmul.f32 %v879, %v879
      %v884 = vmul.f32 %v880, %v880
      %v885 = vmul.f32 %v881, %v881
      %v886 = vmul.f32 %v880, %v473
      %v887 = vmul.f32 %v881, %v478
      %v888 = vlaneseq
      %v889 = vshrl.u32 %v888, 7
      %v890 = vsub.s32 1, %v889
      %v891 = vrot.slane %v858, %v890
      %892 = vset.pattern.permute.xlu0 1
      %893 = vperm.xlu0 %892, %v855
      %v894 = vpop.permute.xlu0 %893
      %896 = vset.pattern.permute.xlu0 1
      %897 = vperm.xlu0 %896, %v856
      %v898 = vpop.permute.xlu0 %897
      %v900 = vsub.f32 %v891, %v894
      %v901 = vsub.f32 %v891, %v898
      %v902 = vadd.f32 %v900, 1e-06
      %v903 = vadd.f32 %v901, 1e-06
      %v904 = vmul.f32 %v900, %v900
      %v905 = vmul.f32 %v901, %v901
      %v906 = vadd.f32 %v882, %v904
      %v907 = vadd.f32 %v883, %v905
      %v908 = vmul.f32 %v902, %v902
      %v909 = vmul.f32 %v903, %v903
      %v910 = vadd.f32 %v884, %v908
      %v911 = vadd.f32 %v885, %v909
      %v912 = vmul.f32 %v902, %v508
      %v913 = vmul.f32 %v903, %v512
      %v914 = vadd.f32 %v886, %v912
      %v915 = vadd.f32 %v887, %v913
      %v916 = vlaneseq
      %v917 = vshrl.u32 %v916, 7
      %v918 = vsub.s32 2, %v917
      %v919 = vrot.slane %v858, %v918
      %920 = vset.pattern.permute.xlu0 2
      %921 = vperm.xlu0 %920, %v855
      %v922 = vpop.permute.xlu0 %921
      %924 = vset.pattern.permute.xlu0 2
      %925 = vperm.xlu0 %924, %v856
      %v926 = vpop.permute.xlu0 %925
      %v928 = vsub.f32 %v919, %v922
      %v929 = vsub.f32 %v919, %v926
      %v930 = vadd.f32 %v928, 1e-06
      %v931 = vadd.f32 %v929, 1e-06
      %v932 = vmul.f32 %v928, %v928
      %v933 = vmul.f32 %v929, %v929
      %v934 = vadd.f32 %v906, %v932
      %v935 = vadd.f32 %v907, %v933
      %v936 = vmul.f32 %v930, %v930
      %v937 = vmul.f32 %v931, %v931
      %v938 = vadd.f32 %v910, %v936
      %v939 = vadd.f32 %v911, %v937
      %v940 = vmul.f32 %v930, %v544
      %v941 = vmul.f32 %v931, %v548
      %v942 = vadd.f32 %v914, %v940
      %v943 = vadd.f32 %v915, %v941
      %v944 = vadd.f32 %v934, 3e-06
      %v945 = vadd.f32 %v935, 3e-06
      %v946 = vrsqrt.pop %v944
      %v947 = vmul.f32 %v944, %v946
      %vm948 = vcmp.eq.f32.partialorder %v944, inf
      %v949 = vsel %vm948, %v944, %v947
      %vm950 = vcmp.eq.f32.partialorder %v944, 0.0
      %v951 = vand.u32 %v944, 2147483648
      %v952 = vsel %vm950, %v951, %v949
      %v953 = vrsqrt.pop %v945
      %v954 = vmul.f32 %v945, %v953
      %vm955 = vcmp.eq.f32.partialorder %v945, inf
      %v956 = vsel %vm955, %v945, %v954
      %vm957 = vcmp.eq.f32.partialorder %v945, 0.0
      %v958 = vand.u32 %v945, 2147483648
      %v959 = vsel %vm957, %v958, %v956
      %v960 = vadd.f32 %v952, 1e-06
      %v961 = vadd.f32 %v959, 1e-06
      %v962 = vrcp.pop %v960
      %v963 = vrcp.pop %v961
      %v964 = vmul.f32 %v960, %v962
      %v965 = vmul.f32 %v961, %v963
      %v966 = vsub.f32 2.0, %v964
      %v967 = vsub.f32 2.0, %v965
      %v968 = vmul.f32 %v962, %v966
      %v969 = vmul.f32 %v963, %v967
      %v970 = vmul.f32 %v960, %v968
      %v971 = vmul.f32 %v961, %v969
      %v972 = vsub.f32 2.0, %v970
      %v973 = vsub.f32 2.0, %v971
      %v974 = vmul.f32 %v968, %v972
      %v975 = vmul.f32 %v969, %v973
      %v976 = vmax.f32 %v938, 1e-24
      %v977 = vmax.f32 %v939, 1e-24
      %v978 = vrsqrt.pop %v976
      %v979 = vrsqrt.pop %v977
      %v981 = vlaneseq
      %v982 = vshrl.u32 %v981, 7
      %v983 = vsub.s32 0, %v982
      %v984 = vrot.slane %v863, %v983
      %987 = vset.pattern.permute.xlu0 0
      %988 = vperm.xlu0 %987, %v860
      %v989 = vpop.permute.xlu0 %988
      %992 = vset.pattern.permute.xlu0 0
      %993 = vperm.xlu0 %992, %v861
      %v994 = vpop.permute.xlu0 %993
      %v996 = vadd.f32 %v984, %v989
      %v997 = vadd.f32 %v984, %v994
      %v998 = vmul.f32 %v974, %v608
      %v999 = vmul.f32 %v975, %v608
      %v1000 = vadd.f32 %v996, %v998
      %v1001 = vadd.f32 %v997, %v999
      %v1002 = vmul.f32 %v974, %v974
      %v1003 = vmul.f32 %v975, %v975
      %v1004 = vmul.f32 %v1002, %v974
      %v1005 = vmul.f32 %v1003, %v975
      %v1006 = vmul.f32 %v430, %v974
      %v1007 = vmul.f32 %v431, %v975
      %v1008 = vmul.f32 %v1006, %v1000
      %v1009 = vmul.f32 %v1007, %v1001
      %v1010 = vmul.f32 %v942, %v978
      %v1011 = vmul.f32 %v943, %v979
      %v1012 = vmul.f32 %v1002, %v1002
      %v1013 = vmul.f32 %v1003, %v1003
      %v1014 = vmul.f32 %v1010, %v1012
      %v1015 = vmul.f32 %v1011, %v1013
      %v1016 = vadd.f32 %v1008, %v1014
      %v1017 = vadd.f32 %v1009, %v1015
      %v1018 = vmul.f32 %v1004, %v1004
      %v1019 = vmul.f32 %v1005, %v1005
      %v1020 = vmul.f32 %v432, %v1018
      %v1021 = vmul.f32 %v433, %v1019
      %v1022 = vadd.f32 %v1016, %v1020
      %v1023 = vadd.f32 %v1017, %v1021
      %v1024 = vmul.f32 %v852, %v1022
      %v1025 = vmul.f32 %v853, %v1023
      %v1026 = vsel %vm637, %v1024, 0.0
      %v1027 = vsel %vm637, %v1025, 0.0
      %v1028 = vadd.f32 %v1026, %v1027
      %1029 = vadd.xlane.f32.xlu0 %v1028
      %v1030 = vpop.xlane.xlu0 %1029
      %v1031 = vrot.slane %v1030, 4
      %v1032 = vadd.f32 %v1030, %v1031
      %v1033 = vrot.slane %v1032, 2
      %v1034 = vadd.f32 %v1032, %v1033
      %v1035 = vrot.slane %v1034, 1
      %v1036 = vadd.f32 %v1034, %v1035
      %s1037 = vtos %v1036
      %v1038 = vstv %s1037
      %s1039 = scalar_lea.vmem %s427, 2
      %1040 = vst.msk [vmem:[%s1039] sm:$0x1] %vm651, %v1038
      %s1041 = scalar_lea.vmem %s397, 12
      %v1042 = vld [vmem:[%s1041] sm:$0x3]
      %v1043 = vld [vmem:[%s1041 + $0x2] sm:$0x3]
      %v1044 = vunpack.c.0.s8 %v1042
      %v1045 = vunpack.c.0.s8 %v1043
      %v1046 = vcvt.s32.f32 %v1044
      %v1047 = vcvt.s32.f32 %v1045
      %s1048 = scalar_lea.vmem %s404, 48
      %v1049 = vld [vmem:[%s1048] sm:$0xff]
      %v1050 = vld [vmem:[%s1048 + $0x8] sm:$0xff]
      %s1051 = scalar_lea.vmem %s410, 12
      %v1052 = vld [vmem:[%s1051] sm:$0x7]
      %s1053 = scalar_lea.vmem %s417, 48
      %v1054 = vld [vmem:[%s1053] sm:$0xff]
      %v1055 = vld [vmem:[%s1053 + $0x8] sm:$0xff]
      %s1056 = scalar_lea.vmem %s422, 3
      %v1057 = vld [vmem:[%s1056] sm:$0x1]
      %v1058 = vlaneseq
      %v1059 = vshrl.u32 %v1058, 7
      %v1060 = vsub.s32 0, %v1059
      %v1061 = vrot.slane %v1052, %v1060
      %1063 = vset.pattern.permute.xlu0 0
      %1064 = vperm.xlu0 %1063, %v1049
      %v1065 = vpop.permute.xlu0 %1064
      %1068 = vset.pattern.permute.xlu0 0
      %1069 = vperm.xlu0 %1068, %v1050
      %v1070 = vpop.permute.xlu0 %1069
      %v1072 = vsub.f32 %v1061, %v1065
      %v1073 = vsub.f32 %v1061, %v1070
      %v1074 = vadd.f32 %v1072, 1e-06
      %v1075 = vadd.f32 %v1073, 1e-06
      %v1076 = vmul.f32 %v1072, %v1072
      %v1077 = vmul.f32 %v1073, %v1073
      %v1078 = vmul.f32 %v1074, %v1074
      %v1079 = vmul.f32 %v1075, %v1075
      %v1080 = vmul.f32 %v1074, %v473
      %v1081 = vmul.f32 %v1075, %v478
      %v1082 = vlaneseq
      %v1083 = vshrl.u32 %v1082, 7
      %v1084 = vsub.s32 1, %v1083
      %v1085 = vrot.slane %v1052, %v1084
      %1086 = vset.pattern.permute.xlu0 1
      %1087 = vperm.xlu0 %1086, %v1049
      %v1088 = vpop.permute.xlu0 %1087
      %1090 = vset.pattern.permute.xlu0 1
      %1091 = vperm.xlu0 %1090, %v1050
      %v1092 = vpop.permute.xlu0 %1091
      %v1094 = vsub.f32 %v1085, %v1088
      %v1095 = vsub.f32 %v1085, %v1092
      %v1096 = vadd.f32 %v1094, 1e-06
      %v1097 = vadd.f32 %v1095, 1e-06
      %v1098 = vmul.f32 %v1094, %v1094
      %v1099 = vmul.f32 %v1095, %v1095
      %v1100 = vadd.f32 %v1076, %v1098
      %v1101 = vadd.f32 %v1077, %v1099
      %v1102 = vmul.f32 %v1096, %v1096
      %v1103 = vmul.f32 %v1097, %v1097
      %v1104 = vadd.f32 %v1078, %v1102
      %v1105 = vadd.f32 %v1079, %v1103
      %v1106 = vmul.f32 %v1096, %v508
      %v1107 = vmul.f32 %v1097, %v512
      %v1108 = vadd.f32 %v1080, %v1106
      %v1109 = vadd.f32 %v1081, %v1107
      %v1110 = vlaneseq
      %v1111 = vshrl.u32 %v1110, 7
      %v1112 = vsub.s32 2, %v1111
      %v1113 = vrot.slane %v1052, %v1112
      %1114 = vset.pattern.permute.xlu0 2
      %1115 = vperm.xlu0 %1114, %v1049
      %v1116 = vpop.permute.xlu0 %1115
      %1118 = vset.pattern.permute.xlu0 2
      %1119 = vperm.xlu0 %1118, %v1050
      %v1120 = vpop.permute.xlu0 %1119
      %v1122 = vsub.f32 %v1113, %v1116
      %v1123 = vsub.f32 %v1113, %v1120
      %v1124 = vadd.f32 %v1122, 1e-06
      %v1125 = vadd.f32 %v1123, 1e-06
      %v1126 = vmul.f32 %v1122, %v1122
      %v1127 = vmul.f32 %v1123, %v1123
      %v1128 = vadd.f32 %v1100, %v1126
      %v1129 = vadd.f32 %v1101, %v1127
      %v1130 = vmul.f32 %v1124, %v1124
      %v1131 = vmul.f32 %v1125, %v1125
      %v1132 = vadd.f32 %v1104, %v1130
      %v1133 = vadd.f32 %v1105, %v1131
      %v1134 = vmul.f32 %v1124, %v544
      %v1135 = vmul.f32 %v1125, %v548
      %v1136 = vadd.f32 %v1108, %v1134
      %v1137 = vadd.f32 %v1109, %v1135
      %v1138 = vadd.f32 %v1128, 3e-06
      %v1139 = vadd.f32 %v1129, 3e-06
      %v1140 = vrsqrt.pop %v1138
      %v1141 = vmul.f32 %v1138, %v1140
      %vm1142 = vcmp.eq.f32.partialorder %v1138, inf
      %v1143 = vsel %vm1142, %v1138, %v1141
      %vm1144 = vcmp.eq.f32.partialorder %v1138, 0.0
      %v1145 = vand.u32 %v1138, 2147483648
      %v1146 = vsel %vm1144, %v1145, %v1143
      %v1147 = vrsqrt.pop %v1139
      %v1148 = vmul.f32 %v1139, %v1147
      %vm1149 = vcmp.eq.f32.partialorder %v1139, inf
      %v1150 = vsel %vm1149, %v1139, %v1148
      %vm1151 = vcmp.eq.f32.partialorder %v1139, 0.0
      %v1152 = vand.u32 %v1139, 2147483648
      %v1153 = vsel %vm1151, %v1152, %v1150
      %v1154 = vadd.f32 %v1146, 1e-06
      %v1155 = vadd.f32 %v1153, 1e-06
      %v1156 = vrcp.pop %v1154
      %v1157 = vrcp.pop %v1155
      %v1158 = vmul.f32 %v1154, %v1156
      %v1159 = vmul.f32 %v1155, %v1157
      %v1160 = vsub.f32 2.0, %v1158
      %v1161 = vsub.f32 2.0, %v1159
      %v1162 = vmul.f32 %v1156, %v1160
      %v1163 = vmul.f32 %v1157, %v1161
      %v1164 = vmul.f32 %v1154, %v1162
      %v1165 = vmul.f32 %v1155, %v1163
      %v1166 = vsub.f32 2.0, %v1164
      %v1167 = vsub.f32 2.0, %v1165
      %v1168 = vmul.f32 %v1162, %v1166
      %v1169 = vmul.f32 %v1163, %v1167
      %v1170 = vmax.f32 %v1132, 1e-24
      %v1171 = vmax.f32 %v1133, 1e-24
      %v1172 = vrsqrt.pop %v1170
      %v1173 = vrsqrt.pop %v1171
      %v1175 = vlaneseq
      %v1176 = vshrl.u32 %v1175, 7
      %v1177 = vsub.s32 0, %v1176
      %v1178 = vrot.slane %v1057, %v1177
      %1181 = vset.pattern.permute.xlu0 0
      %1182 = vperm.xlu0 %1181, %v1054
      %v1183 = vpop.permute.xlu0 %1182
      %1186 = vset.pattern.permute.xlu0 0
      %1187 = vperm.xlu0 %1186, %v1055
      %v1188 = vpop.permute.xlu0 %1187
      %v1190 = vadd.f32 %v1178, %v1183
      %v1191 = vadd.f32 %v1178, %v1188
      %v1192 = vmul.f32 %v1168, %v608
      %v1193 = vmul.f32 %v1169, %v608
      %v1194 = vadd.f32 %v1190, %v1192
      %v1195 = vadd.f32 %v1191, %v1193
      %v1196 = vmul.f32 %v1168, %v1168
      %v1197 = vmul.f32 %v1169, %v1169
      %v1198 = vmul.f32 %v1196, %v1168
      %v1199 = vmul.f32 %v1197, %v1169
      %v1200 = vmul.f32 %v430, %v1168
      %v1201 = vmul.f32 %v431, %v1169
      %v1202 = vmul.f32 %v1200, %v1194
      %v1203 = vmul.f32 %v1201, %v1195
      %v1204 = vmul.f32 %v1136, %v1172
      %v1205 = vmul.f32 %v1137, %v1173
      %v1206 = vmul.f32 %v1196, %v1196
      %v1207 = vmul.f32 %v1197, %v1197
      %v1208 = vmul.f32 %v1204, %v1206
      %v1209 = vmul.f32 %v1205, %v1207
      %v1210 = vadd.f32 %v1202, %v1208
      %v1211 = vadd.f32 %v1203, %v1209
      %v1212 = vmul.f32 %v1198, %v1198
      %v1213 = vmul.f32 %v1199, %v1199
      %v1214 = vmul.f32 %v432, %v1212
      %v1215 = vmul.f32 %v433, %v1213
      %v1216 = vadd.f32 %v1210, %v1214
      %v1217 = vadd.f32 %v1211, %v1215
      %v1218 = vmul.f32 %v1046, %v1216
      %v1219 = vmul.f32 %v1047, %v1217
      %v1220 = vsel %vm637, %v1218, 0.0
      %v1221 = vsel %vm637, %v1219, 0.0
      %v1222 = vadd.f32 %v1220, %v1221
      %1223 = vadd.xlane.f32.xlu0 %v1222
      %v1224 = vpop.xlane.xlu0 %1223
      %v1225 = vrot.slane %v1224, 4
      %v1226 = vadd.f32 %v1224, %v1225
      %v1227 = vrot.slane %v1226, 2
      %v1228 = vadd.f32 %v1226, %v1227
      %v1229 = vrot.slane %v1228, 1
      %v1230 = vadd.f32 %v1228, %v1229
      %s1231 = vtos %v1230
      %v1232 = vstv %s1231
      %s1233 = scalar_lea.vmem %s427, 3
      %1234 = vst.msk [vmem:[%s1233] sm:$0x1] %vm651, %v1232
      %s1235 = smul.u32 4, %s21
      %p1236 = scmp.lt.s32.totalorder %s1235, 7
      %s1237 = scalar_select %p1236, %s1235, 7
      %s1238 = scalar_lea.vmem %s9, %s1237
      // Predicated region
      $region57: #{electrostatics_forward.1} parent=55 // pred_check
        %p1239 = pneg %p253
      $region58: #{electrostatics_forward.1} parent=55 // pred_check_branch
        %1241 = sbr.rel (%p1239) target = $region60
      $region59: #{electrostatics_forward.1} parent=55 // pred_region
        %s1242 = smul.u32 4, %s21
      $region60: #{electrostatics_forward.1} parent=55 // pred_fallthru
        _
    $region56: #{electrostatics_forward.1} parent=5 // pred_fallthru
      _
    %p1243 = scmp.le.s32.totalorder 2, %s16
    // Predicated region
    $region61: #{electrostatics_forward.1} parent=5 // pred_check
      %p1244 = pneg %p1243
    $region62: #{electrostatics_forward.1} parent=5 // pred_check_branch
      %1246 = sbr.rel (%p1244) target = $region64
    $region63: #{electrostatics_forward.1} parent=5 // pred_region
      %s1247 = ssub.s32 %s16, 2
      // Predicated region
      $region65: #{electrostatics_forward.1} parent=63 // pred_check
        %p1248 = pneg %p259
      $region66: #{electrostatics_forward.1} parent=63 // pred_check_branch
        %1250 = sbr.rel (%p1248) target = $region68
      $region67: #{electrostatics_forward.1} parent=63 // pred_region
        %s1251 = smul.u32 4, %s22
        %p1252 = scmp.lt.s32.totalorder %s1251, 7
        %s1253 = scalar_select %p1252, %s1251, 7
        %s1254 = scalar_lea.vmem %s9, %s1253
      $region68: #{electrostatics_forward.1} parent=63 // pred_fallthru
        _
    $region64: #{electrostatics_forward.1} parent=5 // pred_fallthru
      _
  $region6: #{electrostatics_forward.1} parent=0 // loop_footer
    %s20 = sadd.s32 1, %s16
  $region7: #{electrostatics_forward.1} parent=0 // loop_footer_branch
    %15 = sbr.rel target = $region3
  $region8: #{electrostatics_forward.1} parent=0 // loop_exit
    _

</llo_original>
